<compile_context>
chip_gen: v7x
topology: tpu7x:2x2x1
jax: 0.10.0
libtpu: 0.0.40
codegen_flags: <defaults>
</compile_context>

<pallas_src>
import jax
import jax.numpy as jnp
from jax.experimental import pallas as pl
from jax.experimental.pallas import tpu as pltpu

MAX_WORD_LEN = 21        # as in the PyTorch module
M_PAD = 24               # word-position axis padded to a multiple of 8
CHAR_EMB = 50            # char_emb_size
KERNEL = 5               # conv window_size
T_CONV = MAX_WORD_LEN - KERNEL + 1   # 17 valid conv positions


def _round_up(x, m):
    return (x + m - 1) // m * m


def _vmem_capacity_bytes(default=64 * 1024 * 1024):
    """Physical VMEM per TensorCore (128 MiB v5e/v6e, 64 MiB v7x); safe default."""
    try:
        cap = getattr(pltpu.get_tpu_info(), "vmem_capacity_bytes", None)
        if cap:
            return int(cap)
    except Exception:
        pass
    return default


def char_cnn_highway_kernel(ids_ref, fw_ref, bc_ref, whw_ref, bhw_ref, o_ref):
    """One grid step = `tn` words.

    ids_ref: (tn, M_PAD) int32      character ids (cols >= 21 are unused pad)
    fw_ref : (K, VP, EP) bf16       fused (char-emb @ conv) weight
    bc_ref : (1, EP)     f32        conv bias (lane padded)
    whw_ref: (EP, 2*EP)  bf16       [W_proj^T | W_gate^T] (lane padded)
    bhw_ref: (1, 2*EP)   f32        [b_proj   | b_gate]
    o_ref  : (tn, EP)    f32        highway output (lane dense; sliced outside)
    """
    tn = ids_ref.shape[0]
    vp = fw_ref.shape[1]
    ep = bc_ref.shape[1]

    # (word-pos, word) layout: every minor-dim shape below is (tn, VP/EP), i.e.
    # fully (8,128)-aligned; the per-tap slices only select leading slabs.
    ids_t = jnp.transpose(ids_ref[...], (1, 0))                   # (M_PAD, tn)

    # One-hot built ONCE over the raw positions, bf16 (0/1 exact in bf16).
    iota_v = jax.lax.broadcasted_iota(jnp.int32, (1, 1, vp), 2)   # lane iota
    oh = (ids_t[:, :, None] == iota_v).astype(jnp.bfloat16)       # (M_PAD,tn,VP)

    # Conv1d(k=5): 5 tap matmuls, bf16 x bf16 -> f32 accumulate on the MXU.
    #   acc[t, n, e] = sum_w fw[w, ids[n, t+w], e]
    acc = jnp.zeros((T_CONV, tn, ep), jnp.float32)
    for w in range(KERNEL):                               # static 5-tap unroll
        acc = acc + jax.lax.dot_general(
            oh[w:w + T_CONV], fw_ref[w],
            dimension_numbers=(((2,), (0,)), ((), ())),
            preferred_element_type=jnp.float32)           # (T_CONV, tn, EP)

    # Bias + ReLU + max-over-time (elementwise max over 17 leading slabs).
    conv = jnp.maximum(acc + bc_ref[...].reshape(1, 1, ep), 0.0)
    h = jnp.max(conv, axis=0)                             # (tn, EP) f32

    # Highway: proj & gate share one bf16 matmul; tail stays f32.
    hw = jnp.dot(h.astype(jnp.bfloat16), whw_ref[...],
                 preferred_element_type=jnp.float32) + bhw_ref[...]
    proj = jnp.maximum(hw[:, :ep], 0.0)
    gate = jax.nn.sigmoid(hw[:, ep:])
    o_ref[...] = (gate * proj + (1.0 - gate) * h).astype(o_ref.dtype)


def prepare_params(emb_table, conv_w, conv_b, w_proj, b_proj, w_gate, b_gate):
    """One-time weight packing (hoisted out of the per-forward path).

    emb_table: (vocab, 50) with padding row zeroed.
    conv_w: PyTorch Conv1d layout (E, 50, 5); w_proj/w_gate: PyTorch Linear (E, E).
    """
    V, C = emb_table.shape
    assert C == CHAR_EMB
    E = conv_w.shape[0]
    EP = _round_up(E, 128)    # lane-dense matmul N-dim / output stores
    VP = _round_up(V, 128)    # lane-dense one-hot / MXU contraction depth

    f32 = jnp.float32
    # Fused (embedding @ conv) weight: fw[w,v,e] = sum_c emb[v,c]*conv_w[e,c,w].
    fw = jnp.einsum('vc,ecw->wve', emb_table.astype(f32), conv_w.astype(f32))
    fw = jnp.pad(fw, ((0, 0), (0, VP - V), (0, EP - E))).astype(jnp.bfloat16)
    bc = jnp.pad(conv_b.astype(f32).reshape(1, E), ((0, 0), (0, EP - E)))

    # Combined highway weight [W_proj^T | W_gate^T] and bias, lane padded.
    whw = jnp.zeros((EP, 2 * EP), f32)
    whw = whw.at[:E, :E].set(w_proj.T.astype(f32))
    whw = whw.at[:E, EP:EP + E].set(w_gate.T.astype(f32))
    whw = whw.astype(jnp.bfloat16)
    bhw = jnp.zeros((1, 2 * EP), f32)
    bhw = bhw.at[0, :E].set(b_proj.astype(f32))
    bhw = bhw.at[0, EP:EP + E].set(b_gate.astype(f32))

    return dict(fw=fw, bc=bc, whw=whw, bhw=bhw, E=E, EP=EP, VP=VP)


def model_embeddings_forward(input_ids, params, *, tn=512):
    """input_ids: (sent_len, batch, 21) int -> (sent_len, batch, E) float32."""
    L, B, M = input_ids.shape
    assert M == MAX_WORD_LEN
    E, EP, VP = params["E"], params["EP"], params["VP"]
    fw, bc, whw, bhw = params["fw"], params["bc"], params["whw"], params["bhw"]
    N = L * B

    # int32 char ids are the only per-word HBM traffic into the kernel.
    ids = input_ids.reshape(N, M).astype(jnp.int32)
    ids = jnp.pad(ids, ((0, 0), (0, M_PAD - M)))     # word axis 21 -> 24
                                                     # (pad cols never used)

    # --- Row-tile selection: fit each generation's VMEM (64 MiB v7x,
    # 128 MiB v5e/v6e), amortize the ~0.35us/step overhead, and keep the
    # parallel grid >= 2 steps so both v7x TensorCores get work.
    weight_bytes = fw.size * 2 + whw.size * 2 + bc.size * 4 + bhw.size * 4
    per_row = (M_PAD * VP * 2               # bf16 one-hot
               + 2 * T_CONV * EP * 4        # f32 acc + conv
               + 8 * EP * 4                 # h / hw / proj / gate temporaries
               + 2 * (M_PAD * 4 + EP * 4))  # double-buffered ids / out tiles
    per_row *= 2                            # headroom for compiler temporaries

    vmem_limit = min((_vmem_capacity_bytes() * 3) // 4, 96 * 1024 * 1024)
    tile_budget = vmem_limit - 2 * weight_bytes - 4 * 1024 * 1024
    tn_fit = max(8, (tile_budget // per_row) // 8 * 8)

    tn_eff = max(8, min(_round_up(tn, 8), tn_fit, _round_up(N, 8)))
    if N > 8:
        tn_eff = min(tn_eff, _round_up((N + 1) // 2, 8))   # >= 2 grid steps
    n_pad = _round_up(N, tn_eff)
    grid = (n_pad // tn_eff,)

    if n_pad != N:
        ids = jnp.pad(ids, ((0, n_pad - N), (0, 0)))  # padded rows sliced away

    cost = pl.CostEstimate(
        flops=2 * n_pad * (KERNEL * T_CONV * VP * EP + EP * 2 * EP),
        transcendentals=n_pad * EP,
        bytes_accessed=n_pad * (M_PAD * 4 + EP * 4) + weight_bytes)

    out = pl.pallas_call(
        char_cnn_highway_kernel,
        out_shape=jax.ShapeDtypeStruct((n_pad, EP), jnp.float32),
        grid_spec=pltpu.PrefetchScalarGridSpec(
            num_scalar_prefetch=0,
            grid=grid,
            in_specs=[
                pl.BlockSpec((tn_eff, M_PAD), lambda i: (i, 0)),        # ids
                pl.BlockSpec((KERNEL, VP, EP), lambda i: (0, 0, 0)),    # fw
                pl.BlockSpec((1, EP), lambda i: (0, 0)),                # bc
                pl.BlockSpec((EP, 2 * EP), lambda i: (0, 0)),           # whw
                pl.BlockSpec((1, 2 * EP), lambda i: (0, 0)),            # bhw
            ],
            out_specs=pl.BlockSpec((tn_eff, EP), lambda i: (i, 0)),
        ),
        compiler_params=pltpu.CompilerParams(
            dimension_semantics=("parallel",),
            vmem_limit_bytes=int(vmem_limit)),
        cost_estimate=cost,
    )(ids, fw, bc, whw, bhw)

    return out[:N, :E].reshape(L, B, E)


def reference_forward(input_ids, emb_table, conv_w, conv_b,
                      w_proj, b_proj, w_gate, b_gate):
    """Pure-JAX f32 reference mirroring the PyTorch forward."""
    L, B, M = input_ids.shape
    E = conv_w.shape[0]
    x = emb_table[input_ids.reshape(L * B, M)]               # (N, 21, 50)
    x_ncw = jnp.transpose(x, (0, 2, 1))                      # NCW like PyTorch
    conv = jax.lax.conv_general_dilated(
        x_ncw, conv_w, window_strides=(1,), padding='VALID',
        dimension_numbers=('NCH', 'OIH', 'NCH'))             # (N, E, 17)
    conv = jnp.maximum(conv + conv_b[None, :, None], 0.0)
    h = jnp.max(conv, axis=-1)                               # (N, E)
    proj = jnp.maximum(h @ w_proj.T + b_proj, 0.0)
    gate = jax.nn.sigmoid(h @ w_gate.T + b_gate)
    out = gate * proj + (1.0 - gate) * h
    return out.reshape(L, B, E)


if __name__ == "__main__":
    # Small shapes consistent with the module's forward.
    L, B = 8, 2                 # sentence_length, batch_size
    E = 32                      # embed_size
    VOCAB = 30                  # char vocab size
    PAD_IDX = 0

    key = jax.random.PRNGKey(0)
    k_emb, k_cw, k_cb, k_pw, k_pb, k_gw, k_gb, k_in = jax.random.split(key, 8)

    emb_table = jax.random.normal(k_emb, (VOCAB, CHAR_EMB), jnp.float32) * 0.1
    emb_table = emb_table.at[PAD_IDX].set(0.0)               # padding_idx row

    conv_w = jax.random.normal(k_cw, (E, CHAR_EMB, KERNEL), jnp.float32) * 0.1
    conv_b = jax.random.normal(k_cb, (E,), jnp.float32) * 0.1
    w_proj = jax.random.normal(k_pw, (E, E), jnp.float32) * 0.1
    b_proj = jax.random.normal(k_pb, (E,), jnp.float32) * 0.1
    w_gate = jax.random.normal(k_gw, (E, E), jnp.float32) * 0.1
    b_gate = jax.random.normal(k_gb, (E,), jnp.float32) * 0.1

    input_ids = jax.random.randint(k_in, (L, B, MAX_WORD_LEN), 0, VOCAB,
                                   dtype=jnp.int32)

    params = prepare_params(emb_table, conv_w, conv_b,
                            w_proj, b_proj, w_gate, b_gate)   # one-time packing
    out = model_embeddings_forward(input_ids, params)
    out = jax.block_until_ready(out)

    ref = reference_forward(input_ids, emb_table, conv_w, conv_b,
                            w_proj, b_proj, w_gate, b_gate)
    assert out.shape == (L, B, E)
    # bf16 MXU operands (fw / whw / h) loosen the match vs. the pure-f32
    # reference; 2e-2 is ~10x the expected deviation at these magnitudes.
    assert jnp.allclose(out, ref, atol=2e-2, rtol=2e-2), \
        float(jnp.max(jnp.abs(out - ref)))
    print("KERNEL_OK")
</pallas_src>

<mosaic_0001>
module attributes {stable_mosaic.version = 11 : i64} {
  func.func @char_cnn_highway_kernel(%arg0: i32, %arg1: memref<8x24xi32, #tpu.memory_space<vmem>>, %arg2: memref<5x128x128xbf16, #tpu.memory_space<vmem>>, %arg3: memref<1x128xf32, #tpu.memory_space<vmem>>, %arg4: memref<128x256xbf16, #tpu.memory_space<vmem>>, %arg5: memref<1x256xf32, #tpu.memory_space<vmem>>, %arg6: memref<8x128xf32, #tpu.memory_space<vmem>>) attributes {dimension_semantics = [#tpu.dimension_semantics<parallel>], iteration_bounds = array<i64: 2>, scalar_prefetch = 0 : i64, scratch_operands = 0 : i64, tpu.core_type = #tpu.core_type<tc>, window_params = [{transform_indices = @transform_0, window_bounds = array<i64: 8, 24>}, {pipeline_mode = #tpu.pipeline_mode<synchronous>, transform_indices = @transform_1, window_bounds = array<i64: 5, 128, 128>}, {pipeline_mode = #tpu.pipeline_mode<synchronous>, transform_indices = @transform_2, window_bounds = array<i64: 1, 128>}, {pipeline_mode = #tpu.pipeline_mode<synchronous>, transform_indices = @transform_3, window_bounds = array<i64: 128, 256>}, {pipeline_mode = #tpu.pipeline_mode<synchronous>, transform_indices = @transform_4, window_bounds = array<i64: 1, 256>}, {transform_indices = @transform_5, window_bounds = array<i64: 8, 128>}]} {
    %c0 = arith.constant 0 : index
    %c0_0 = arith.constant 0 : index
    %0 = vector.load %arg1[%c0, %c0_0] : memref<8x24xi32, #tpu.memory_space<vmem>>, vector<8x24xi32>
    %1 = tpu.transpose %0, [1, 0] : vector<8x24xi32> -> vector<24x8xi32>
    %2 = tpu.iota {dimensions = array<i32: 2>} : vector<1x1x128xi32>
    %3 = vector.shape_cast %1 : vector<24x8xi32> to vector<24x8x1xi32>
    %4 = vector.broadcast %3 : vector<24x8x1xi32> to vector<24x8x128xi32>
    %5 = vector.broadcast %2 : vector<1x1x128xi32> to vector<24x8x128xi32>
    %6 = arith.cmpi eq, %4, %5 : vector<24x8x128xi32>
    %7 = arith.extui %6 : vector<24x8x128xi1> to vector<24x8x128xi32>
    %8 = arith.sitofp %7 : vector<24x8x128xi32> to vector<24x8x128xf32>
    %9 = arith.truncf %8 : vector<24x8x128xf32> to vector<24x8x128xbf16>
    %cst = arith.constant 0.000000e+00 : f32
    %10 = vector.broadcast %cst : f32 to vector<17x8x128xf32>
    %11 = vector.extract_strided_slice %9 {offsets = [0, 0, 0], sizes = [17, 8, 128], strides = [1, 1, 1]} : vector<24x8x128xbf16> to vector<17x8x128xbf16>
    %c0_1 = arith.constant 0 : index
    %c0_2 = arith.constant 0 : index
    %c0_3 = arith.constant 0 : index
    %12 = vector.load %arg2[%c0_1, %c0_2, %c0_3] : memref<5x128x128xbf16, #tpu.memory_space<vmem>>, vector<1x128x128xbf16>
    %13 = vector.shape_cast %12 : vector<1x128x128xbf16> to vector<128x128xbf16>
    %cst_4 = arith.constant dense<0.000000e+00> : vector<17x8x128xf32>
    %14 = tpu.matmul %11, %13, %cst_4 {dimension_numbers = #tpu.dot_dimension_numbers<[2], [0], [0, 1], [1], [0, 0, 0, 1, 1, 1], [], []>} : vector<17x8x128xbf16>, vector<128x128xbf16>, vector<17x8x128xf32> -> vector<17x8x128xf32>
    %15 = arith.addf %10, %14 : vector<17x8x128xf32>
    %16 = vector.extract_strided_slice %9 {offsets = [1, 0, 0], sizes = [17, 8, 128], strides = [1, 1, 1]} : vector<24x8x128xbf16> to vector<17x8x128xbf16>
    %c1 = arith.constant 1 : index
    %c0_5 = arith.constant 0 : index
    %c0_6 = arith.constant 0 : index
    %17 = vector.load %arg2[%c1, %c0_5, %c0_6] : memref<5x128x128xbf16, #tpu.memory_space<vmem>>, vector<1x128x128xbf16>
    %18 = vector.shape_cast %17 : vector<1x128x128xbf16> to vector<128x128xbf16>
    %cst_7 = arith.constant dense<0.000000e+00> : vector<17x8x128xf32>
    %19 = tpu.matmul %16, %18, %cst_7 {dimension_numbers = #tpu.dot_dimension_numbers<[2], [0], [0, 1], [1], [0, 0, 0, 1, 1, 1], [], []>} : vector<17x8x128xbf16>, vector<128x128xbf16>, vector<17x8x128xf32> -> vector<17x8x128xf32>
    %20 = arith.addf %15, %19 : vector<17x8x128xf32>
    %21 = vector.extract_strided_slice %9 {offsets = [2, 0, 0], sizes = [17, 8, 128], strides = [1, 1, 1]} : vector<24x8x128xbf16> to vector<17x8x128xbf16>
    %c2 = arith.constant 2 : index
    %c0_8 = arith.constant 0 : index
    %c0_9 = arith.constant 0 : index
    %22 = vector.load %arg2[%c2, %c0_8, %c0_9] : memref<5x128x128xbf16, #tpu.memory_space<vmem>>, vector<1x128x128xbf16>
    %23 = vector.shape_cast %22 : vector<1x128x128xbf16> to vector<128x128xbf16>
    %cst_10 = arith.constant dense<0.000000e+00> : vector<17x8x128xf32>
    %24 = tpu.matmul %21, %23, %cst_10 {dimension_numbers = #tpu.dot_dimension_numbers<[2], [0], [0, 1], [1], [0, 0, 0, 1, 1, 1], [], []>} : vector<17x8x128xbf16>, vector<128x128xbf16>, vector<17x8x128xf32> -> vector<17x8x128xf32>
    %25 = arith.addf %20, %24 : vector<17x8x128xf32>
    %26 = vector.extract_strided_slice %9 {offsets = [3, 0, 0], sizes = [17, 8, 128], strides = [1, 1, 1]} : vector<24x8x128xbf16> to vector<17x8x128xbf16>
    %c3 = arith.constant 3 : index
    %c0_11 = arith.constant 0 : index
    %c0_12 = arith.constant 0 : index
    %27 = vector.load %arg2[%c3, %c0_11, %c0_12] : memref<5x128x128xbf16, #tpu.memory_space<vmem>>, vector<1x128x128xbf16>
    %28 = vector.shape_cast %27 : vector<1x128x128xbf16> to vector<128x128xbf16>
    %cst_13 = arith.constant dense<0.000000e+00> : vector<17x8x128xf32>
    %29 = tpu.matmul %26, %28, %cst_13 {dimension_numbers = #tpu.dot_dimension_numbers<[2], [0], [0, 1], [1], [0, 0, 0, 1, 1, 1], [], []>} : vector<17x8x128xbf16>, vector<128x128xbf16>, vector<17x8x128xf32> -> vector<17x8x128xf32>
    %30 = arith.addf %25, %29 : vector<17x8x128xf32>
    %31 = vector.extract_strided_slice %9 {offsets = [4, 0, 0], sizes = [17, 8, 128], strides = [1, 1, 1]} : vector<24x8x128xbf16> to vector<17x8x128xbf16>
    %c4 = arith.constant 4 : index
    %c0_14 = arith.constant 0 : index
    %c0_15 = arith.constant 0 : index
    %32 = vector.load %arg2[%c4, %c0_14, %c0_15] : memref<5x128x128xbf16, #tpu.memory_space<vmem>>, vector<1x128x128xbf16>
    %33 = vector.shape_cast %32 : vector<1x128x128xbf16> to vector<128x128xbf16>
    %cst_16 = arith.constant dense<0.000000e+00> : vector<17x8x128xf32>
    %34 = tpu.matmul %31, %33, %cst_16 {dimension_numbers = #tpu.dot_dimension_numbers<[2], [0], [0, 1], [1], [0, 0, 0, 1, 1, 1], [], []>} : vector<17x8x128xbf16>, vector<128x128xbf16>, vector<17x8x128xf32> -> vector<17x8x128xf32>
    %35 = arith.addf %30, %34 : vector<17x8x128xf32>
    %c0_17 = arith.constant 0 : index
    %c0_18 = arith.constant 0 : index
    %36 = vector.load %arg3[%c0_17, %c0_18] : memref<1x128xf32, #tpu.memory_space<vmem>>, vector<1x128xf32>
    %37 = vector.shape_cast %36 : vector<1x128xf32> to vector<1x1x128xf32>
    %38 = vector.broadcast %37 : vector<1x1x128xf32> to vector<17x8x128xf32>
    %39 = arith.addf %35, %38 : vector<17x8x128xf32>
    %cst_19 = arith.constant 0.000000e+00 : f32
    %40 = vector.broadcast %cst_19 : f32 to vector<17x8x128xf32>
    %41 = arith.maximumf %39, %40 : vector<17x8x128xf32>
    %cst_20 = arith.constant dense<0xFF800000> : vector<8x128xf32>
    %42 = vector.multi_reduction <maximumf>, %41, %cst_20 [0] : vector<17x8x128xf32> to vector<8x128xf32>
    %43 = arith.truncf %42 : vector<8x128xf32> to vector<8x128xbf16>
    %c0_21 = arith.constant 0 : index
    %c0_22 = arith.constant 0 : index
    %44 = vector.load %arg4[%c0_21, %c0_22] : memref<128x256xbf16, #tpu.memory_space<vmem>>, vector<128x256xbf16>
    %cst_23 = arith.constant dense<0.000000e+00> : vector<8x256xf32>
    %45 = tpu.matmul %43, %44, %cst_23 {dimension_numbers = #tpu.dot_dimension_numbers<[1], [0], [0], [1], [0, 0, 1, 1], [], []>} : vector<8x128xbf16>, vector<128x256xbf16>, vector<8x256xf32> -> vector<8x256xf32>
    %c0_24 = arith.constant 0 : index
    %c0_25 = arith.constant 0 : index
    %46 = vector.load %arg5[%c0_24, %c0_25] : memref<1x256xf32, #tpu.memory_space<vmem>>, vector<1x256xf32>
    %47 = vector.broadcast %46 : vector<1x256xf32> to vector<8x256xf32>
    %48 = arith.addf %45, %47 : vector<8x256xf32>
    %49 = vector.extract_strided_slice %48 {offsets = [0, 0], sizes = [8, 128], strides = [1, 1]} : vector<8x256xf32> to vector<8x128xf32>
    %cst_26 = arith.constant 0.000000e+00 : f32
    %50 = vector.broadcast %cst_26 : f32 to vector<8x128xf32>
    %51 = arith.maximumf %49, %50 : vector<8x128xf32>
    %52 = vector.extract_strided_slice %48 {offsets = [0, 128], sizes = [8, 128], strides = [1, 1]} : vector<8x256xf32> to vector<8x128xf32>
    %53 = arith.negf %52 : vector<8x128xf32>
    %54 = math.exp %53 : vector<8x128xf32>
    %cst_27 = arith.constant 1.000000e+00 : f32
    %55 = vector.broadcast %cst_27 : f32 to vector<8x128xf32>
    %56 = arith.addf %55, %54 : vector<8x128xf32>
    %57 = arith.divf %55, %56 : vector<8x128xf32>
    %58 = arith.mulf %57, %51 : vector<8x128xf32>
    %cst_28 = arith.constant 1.000000e+00 : f32
    %59 = vector.broadcast %cst_28 : f32 to vector<8x128xf32>
    %60 = arith.subf %59, %57 : vector<8x128xf32>
    %61 = arith.mulf %60, %42 : vector<8x128xf32>
    %62 = arith.addf %58, %61 : vector<8x128xf32>
    %c0_29 = arith.constant 0 : index
    %c0_30 = arith.constant 0 : index
    %63 = vector.load %arg6[%c0_29, %c0_30] : memref<8x128xf32, #tpu.memory_space<vmem>>, vector<8x128xf32>
    tpu.vector_store %arg6[%c0_29, %c0_30], %62 {strides = array<i32>} : memref<8x128xf32, #tpu.memory_space<vmem>>, vector<8x128xf32>,
    return
  }
  func.func @transform_0(%arg0: i32) -> (i32, i32) {
    %c0_i32 = arith.constant 0 : i32
    %c0_i32_0 = arith.constant 0 : i32
    return %arg0, %c0_i32 : i32, i32
  }
  func.func @transform_1(%arg0: i32) -> (i32, i32, i32) {
    %c0_i32 = arith.constant 0 : i32
    %c0_i32_0 = arith.constant 0 : i32
    %c0_i32_1 = arith.constant 0 : i32
    %c0_i32_2 = arith.constant 0 : i32
    return %c0_i32, %c0_i32_0, %c0_i32_1 : i32, i32, i32
  }
  func.func @transform_2(%arg0: i32) -> (i32, i32) {
    %c0_i32 = arith.constant 0 : i32
    %c0_i32_0 = arith.constant 0 : i32
    %c0_i32_1 = arith.constant 0 : i32
    return %c0_i32, %c0_i32_0 : i32, i32
  }
  func.func @transform_3(%arg0: i32) -> (i32, i32) {
    %c0_i32 = arith.constant 0 : i32
    %c0_i32_0 = arith.constant 0 : i32
    %c0_i32_1 = arith.constant 0 : i32
    return %c0_i32, %c0_i32_0 : i32, i32
  }
  func.func @transform_4(%arg0: i32) -> (i32, i32) {
    %c0_i32 = arith.constant 0 : i32
    %c0_i32_0 = arith.constant 0 : i32
    %c0_i32_1 = arith.constant 0 : i32
    return %c0_i32, %c0_i32_0 : i32, i32
  }
  func.func @transform_5(%arg0: i32) -> (i32, i32) {
    %c0_i32 = arith.constant 0 : i32
    %c0_i32_0 = arith.constant 0 : i32
    return %arg0, %c0_i32 : i32, i32
  }
}

</mosaic_0001>

<llo_original>
// kernel: tpu_custom_call.1
$region0: #{tpu_custom_call.1}
  #allocation0 [shape = 'u32[]', space=smem, size = 0x4, offset = 0x4, fixed_abs, tag = 'smem constant byte address 0x4 - core index']
  #allocation1 [shape = 'u32[144,128]{1,0:T(1,128)}', space=vmem, size = 0x12000, scoped, tag = 'internal scratch']
  %s0 = inlined_call_operand.hbm [shape: s32[16,24], index: 0, kind: input, shape index: {}]
  %s1 = inlined_call_operand.hbm [shape: bf16[5,128,128], index: 1, kind: input, shape index: {}]
  %s2 = inlined_call_operand.vmem [shape: f32[1,128], index: 2, kind: input, shape index: {}]
  %s3 = inlined_call_operand.hbm [shape: bf16[128,256], index: 3, kind: input, shape index: {}]
  %s4 = inlined_call_operand.vmem [shape: f32[1,256], index: 4, kind: input, shape index: {}]
  %s5 = inlined_call_operand.hbm [shape: f32[16,128], index: 5, kind: output, shape index: {}]
  %s6 = sld [smem:[#allocation0]]
  $region65: #{tpu_custom_call.1} parent=0
    _
  %s8 = ssub.s32 1, %s6
  %s9 = scalar_select 0, %s8, %s6
  $region1: #{tpu_custom_call.1} parent=0
    #allocation2 [shape = 'u8[8192]{0}', space=vmem, size = 0x2000, scoped, tag = 'input window, operand 0']
    #allocation3 [shape = 's32[2]{0}', space=sflag, size = 0x8, scoped, tag = 'scoped memory for tpu_custom_call.1']
    #allocation4 [shape = 's32[2]{0}', space=sflag, size = 0x8, scoped, tag = 'scoped memory for tpu_custom_call.1']
    #allocation5 [shape = 'u8[163840]{0}', space=vmem, size = 0x28000, scoped, tag = 'input window, operand 1, single buffered']
    #allocation6 [shape = 's32[1]{0}', space=sflag, size = 0x4, scoped, tag = 'scoped memory for tpu_custom_call.1']
    #allocation7 [shape = 'u8[65536]{0}', space=vmem, size = 0x10000, scoped, tag = 'input window, operand 3, single buffered']
    #allocation8 [shape = 'u8[8192]{0}', space=vmem, size = 0x2000, scoped, tag = 'output window, operand 0']
    %10 = vsyncpa [#allocation3], 0
    %s11 = scalar_lea.sflag [#allocation3], 1
    %12 = vsyncpa %s11, 0
    %13 = vsyncpa [#allocation6], 0
    %14 = vsyncpa [#allocation4], 0
    %s15 = scalar_lea.sflag [#allocation4], 1
    %16 = vsyncpa %s15, 0
    loop: start=0, step=1, limit=4
    $region2: #{tpu_custom_call.1} parent=1 // loop_pre_header
      _
    $region3: #{tpu_custom_call.1} parent=1 // loop_header
      %s18 = sphi 0, %s22
      %p19 = scmp.ge.s32.totalorder %s18, 4
      %s28 = sphi 0, %s30
      %s31 = sphi 0, %s28
      %s32 = sphi 0, %s31
      %s48 = sphi 0, %s32
      %s52 = sphi 0, %s52
      %s54 = sphi 0, %s52
      %s55 = sphi 0, %s54
      %s69 = sphi 0, %s55
      %s73 = sphi 0, %s73
      %s75 = sphi 0, %s73
      %s76 = sphi 0, %s75
      %s90 = sphi 0, %s76
      %s94 = sphi 0, %s94
      %s96 = sphi 0, %s94
      %s97 = sphi 0, %s96
      %s111 = sphi 0, %s97
      %s115 = sphi 0, %s115
      %s117 = sphi 0, %s115
      %s118 = sphi 0, %s117
      %s132 = sphi 0, %s118
      %s138 = sphi 0, %s140
      %s141 = sphi 0, %s138
      %s142 = sphi 0, %s141
      %s158 = sphi 0, %s142
    $region4: #{tpu_custom_call.1} parent=1 // loop_header_branch
      %21 = sbr.rel (%p19) target = $region8
    $region5: #{tpu_custom_call.1} parent=1 // loop_body
      %s23 = ssub.s32 %s18, 1
      %s24 = ssub.s32 %s18, 2
      %s25 = sadd.s32 %s18, 1
      %s26 = ssub.s32 %s18, %s25
      %p27 = scmp.eq.s32.totalorder %s26, 0
      %s29 = sadd.s32 %s28, 1
      %s30 = scalar_select %p27, %s28, %s29
      %p33 = pneg %p27
      %p34 = scmp.eq.s32.totalorder %s18, 1
      %p35 = por %p33, %p34
      %p36 = scmp.ne.s32.totalorder %s28, %s31
      %p37 = scmp.eq.s32.totalorder %s18, 0
      %p38 = por %p36, %p37
      %p39 = scmp.ne.s32.totalorder %s28, %s31
      %p40 = scmp.eq.s32.totalorder %s23, 1
      %p41 = por %p39, %p40
      %p42 = scmp.ne.s32.totalorder %s31, %s32
      %p43 = scmp.eq.s32.totalorder %s23, 0
      %p44 = por %p42, %p43
      %p45 = scmp.ne.s32.totalorder %s31, %s32
      %p46 = scmp.eq.s32.totalorder %s24, 1
      %p47 = por %p45, %p46
      %p49 = scmp.ne.s32.totalorder %s32, %s48
      %p50 = scmp.eq.s32.totalorder %s24, 0
      %p51 = por %p49, %p50
      %s53 = sadd.s32 %s52, 1
      %p56 = scmp.eq.s32.totalorder %s18, 1
      %p57 = scmp.ne.s32.totalorder %s52, %s54
      %p58 = scmp.eq.s32.totalorder %s18, 0
      %p59 = por %p57, %p58
      %p60 = scmp.ne.s32.totalorder %s52, %s54
      %p61 = scmp.eq.s32.totalorder %s23, 1
      %p62 = por %p60, %p61
      %p63 = scmp.ne.s32.totalorder %s54, %s55
      %p64 = scmp.eq.s32.totalorder %s23, 0
      %p65 = por %p63, %p64
      %p66 = scmp.ne.s32.totalorder %s54, %s55
      %p67 = scmp.eq.s32.totalorder %s24, 1
      %p68 = por %p66, %p67
      %p70 = scmp.ne.s32.totalorder %s55, %s69
      %p71 = scmp.eq.s32.totalorder %s24, 0
      %p72 = por %p70, %p71
      %s74 = sadd.s32 %s73, 1
      %p77 = scmp.eq.s32.totalorder %s18, 1
      %p78 = scmp.ne.s32.totalorder %s73, %s75
      %p79 = scmp.eq.s32.totalorder %s18, 0
      %p80 = por %p78, %p79
      %p81 = scmp.ne.s32.totalorder %s73, %s75
      %p82 = scmp.eq.s32.totalorder %s23, 1
      %p83 = por %p81, %p82
      %p84 = scmp.ne.s32.totalorder %s75, %s76
      %p85 = scmp.eq.s32.totalorder %s23, 0
      %p86 = por %p84, %p85
      %p87 = scmp.ne.s32.totalorder %s75, %s76
      %p88 = scmp.eq.s32.totalorder %s24, 1
      %p89 = por %p87, %p88
      %p91 = scmp.ne.s32.totalorder %s76, %s90
      %p92 = scmp.eq.s32.totalorder %s24, 0
      %p93 = por %p91, %p92
      %s95 = sadd.s32 %s94, 1
      %p98 = scmp.eq.s32.totalorder %s18, 1
      %p99 = scmp.ne.s32.totalorder %s94, %s96
      %p100 = scmp.eq.s32.totalorder %s18, 0
      %p101 = por %p99, %p100
      %p102 = scmp.ne.s32.totalorder %s94, %s96
      %p103 = scmp.eq.s32.totalorder %s23, 1
      %p104 = por %p102, %p103
      %p105 = scmp.ne.s32.totalorder %s96, %s97
      %p106 = scmp.eq.s32.totalorder %s23, 0
      %p107 = por %p105, %p106
      %p108 = scmp.ne.s32.totalorder %s96, %s97
      %p109 = scmp.eq.s32.totalorder %s24, 1
      %p110 = por %p108, %p109
      %p112 = scmp.ne.s32.totalorder %s97, %s111
      %p113 = scmp.eq.s32.totalorder %s24, 0
      %p114 = por %p112, %p113
      %s116 = sadd.s32 %s115, 1
      %p119 = scmp.eq.s32.totalorder %s18, 1
      %p120 = scmp.ne.s32.totalorder %s115, %s117
      %p121 = scmp.eq.s32.totalorder %s18, 0
      %p122 = por %p120, %p121
      %p123 = scmp.ne.s32.totalorder %s115, %s117
      %p124 = scmp.eq.s32.totalorder %s23, 1
      %p125 = por %p123, %p124
      %p126 = scmp.ne.s32.totalorder %s117, %s118
      %p127 = scmp.eq.s32.totalorder %s23, 0
      %p128 = por %p126, %p127
      %p129 = scmp.ne.s32.totalorder %s117, %s118
      %p130 = scmp.eq.s32.totalorder %s24, 1
      %p131 = por %p129, %p130
      %p133 = scmp.ne.s32.totalorder %s118, %s132
      %p134 = scmp.eq.s32.totalorder %s24, 0
      %p135 = por %p133, %p134
      %s136 = ssub.s32 %s18, %s25
      %p137 = scmp.eq.s32.totalorder %s136, 0
      %s139 = sadd.s32 %s138, 1
      %s140 = scalar_select %p137, %s138, %s139
      %p143 = pneg %p137
      %p144 = scmp.eq.s32.totalorder %s18, 1
      %p145 = por %p143, %p144
      %p146 = scmp.ne.s32.totalorder %s138, %s141
      %p147 = scmp.eq.s32.totalorder %s18, 0
      %p148 = por %p146, %p147
      %p149 = scmp.ne.s32.totalorder %s138, %s141
      %p150 = scmp.eq.s32.totalorder %s23, 1
      %p151 = por %p149, %p150
      %p152 = scmp.ne.s32.totalorder %s141, %s142
      %p153 = scmp.eq.s32.totalorder %s23, 0
      %p154 = por %p152, %p153
      %p155 = scmp.ne.s32.totalorder %s141, %s142
      %p156 = scmp.eq.s32.totalorder %s24, 1
      %p157 = por %p155, %p156
      %p159 = scmp.ne.s32.totalorder %s142, %s158
      %p160 = scmp.eq.s32.totalorder %s24, 0
      %p161 = por %p159, %p160
      %p162 = scmp.le.s32.totalorder 1, %s18
      %p163 = scmp.lt.s32.totalorder %s18, 3
      %p164 = pnand %p162, %p163
      %p165 = pneg %p164
      // Predicated region
      $region9: #{tpu_custom_call.1} parent=5 // pred_check
        _
      $region10: #{tpu_custom_call.1} parent=5 // pred_check_branch
        %167 = sbr.rel (%p164) target = $region12
      $region11: #{tpu_custom_call.1} parent=5 // pred_region
        %s168 = ssub.s32 %s18, 1
        // Predicated region
        $region13: #{tpu_custom_call.1} parent=11 // pred_check
          %p169 = pneg %p65
        $region14: #{tpu_custom_call.1} parent=11 // pred_check_branch
          %171 = sbr.rel (%p169) target = $region16
        $region15: #{tpu_custom_call.1} parent=11 // pred_region
          %s173 = ssub.s32 5120, 5120
          %174 = vsyncadd [#allocation6], %s173
          %s175 = sshll.u32 [#allocation5], 4
          %s176 = int_to_ptr.vmem [resolvable:$true] %s175
          %181 = dma.hbm_to_vmem [thread:$0]  %s1, 5120, %s176, [#allocation6], 64, 64, 4
        $region16: #{tpu_custom_call.1} parent=11 // pred_fallthru
          _
        // Predicated region
        $region17: #{tpu_custom_call.1} parent=11 // pred_check
          %p182 = pneg %p86
        $region18: #{tpu_custom_call.1} parent=11 // pred_check_branch
          %184 = sbr.rel (%p182) target = $region20
        $region19: #{tpu_custom_call.1} parent=11 // pred_region
          _
        $region20: #{tpu_custom_call.1} parent=11 // pred_fallthru
          _
        // Predicated region
        $region21: #{tpu_custom_call.1} parent=11 // pred_check
          %p185 = pneg %p107
        $region22: #{tpu_custom_call.1} parent=11 // pred_check_branch
          %187 = sbr.rel (%p185) target = $region24
        $region23: #{tpu_custom_call.1} parent=11 // pred_region
          %s189 = ssub.s32 2048, 2048
          %190 = vsyncadd [#allocation6], %s189
          %s191 = sshll.u32 [#allocation7], 4
          %s192 = int_to_ptr.vmem [resolvable:$true] %s191
          %197 = dma.hbm_to_vmem [thread:$0]  %s3, 2048, %s192, [#allocation6], 128, 128, 8
        $region24: #{tpu_custom_call.1} parent=11 // pred_fallthru
          _
        // Predicated region
        $region25: #{tpu_custom_call.1} parent=11 // pred_check
          %p198 = pneg %p128
        $region26: #{tpu_custom_call.1} parent=11 // pred_check_branch
          %200 = sbr.rel (%p198) target = $region28
        $region27: #{tpu_custom_call.1} parent=11 // pred_region
          _
        $region28: #{tpu_custom_call.1} parent=11 // pred_fallthru
          _
      $region12: #{tpu_custom_call.1} parent=5 // pred_fallthru
        _
      %p201 = scmp.lt.s32.totalorder %s18, 2
      // Predicated region
      $region29: #{tpu_custom_call.1} parent=5 // pred_check
        %p202 = pneg %p201
      $region30: #{tpu_custom_call.1} parent=5 // pred_check_branch
        %204 = sbr.rel (%p202) target = $region32
      $region31: #{tpu_custom_call.1} parent=5 // pred_region
        // Predicated region
        $region33: #{tpu_custom_call.1} parent=31 // pred_check
          %p205 = pneg %p38
        $region34: #{tpu_custom_call.1} parent=31 // pred_check_branch
          %207 = sbr.rel (%p205) target = $region36
        $region35: #{tpu_custom_call.1} parent=31 // pred_region
          %s208 = sand.u32 %s28, 1
          %s209 = scalar_lea.sflag [#allocation3], %s208
          %s210 = sand.u32 %s28, 1
          %s211 = smul.addr %s210, 8
          %s212 = scalar_lea.vmem [#allocation2], %s211
          %s214 = ssub.s32 128, 128
          %215 = vsyncadd %s209, %s214
          %s216 = smul.addr %s18, 128
          %s217 = scalar_lea.hbm %s0, %s216
          %s219 = sshll.u32 %s212, 4
          %s220 = int_to_ptr.vmem [resolvable:$true] %s219
          %222 = dma.hbm_to_vmem [thread:$0]  %s217, 128, %s220, %s209
        $region36: #{tpu_custom_call.1} parent=31 // pred_fallthru
          _
      $region32: #{tpu_custom_call.1} parent=5 // pred_fallthru
        _
      %p223 = scmp.le.s32.totalorder 1, %s18
      %p224 = scmp.lt.s32.totalorder %s18, 3
      %p225 = pnand %p223, %p224
      %p226 = pneg %p225
      // Predicated region
      $region37: #{tpu_custom_call.1} parent=5 // pred_check
        _
      $region38: #{tpu_custom_call.1} parent=5 // pred_check_branch
        %228 = sbr.rel (%p225) target = $region40
      $region39: #{tpu_custom_call.1} parent=5 // pred_region
        %s229 = ssub.s32 %s18, 1
        %s230 = sand.u32 %s31, 1
        %s231 = scalar_lea.sflag [#allocation3], %s230
        %s232 = sand.u32 %s31, 1
        %s233 = smul.addr %s232, 8
        %s234 = scalar_lea.vmem [#allocation2], %s233
        // Predicated region
        $region41: #{tpu_custom_call.1} parent=39 // pred_check
          %p235 = pneg %p44
        $region42: #{tpu_custom_call.1} parent=39 // pred_check_branch
          %237 = sbr.rel (%p235) target = $region44
        $region43: #{tpu_custom_call.1} parent=39 // pred_region
          %238 = dma.done %s231, 128
        $region44: #{tpu_custom_call.1} parent=39 // pred_fallthru
          _
        // Predicated region
        $region45: #{tpu_custom_call.1} parent=39 // pred_check
          %p239 = pneg %p65
        $region46: #{tpu_custom_call.1} parent=39 // pred_check_branch
          %241 = sbr.rel (%p239) target = $region48
        $region47: #{tpu_custom_call.1} parent=39 // pred_region
          %242 = dma.done [#allocation6], 5120
        $region48: #{tpu_custom_call.1} parent=39 // pred_fallthru
          _
        // Predicated region
        $region49: #{tpu_custom_call.1} parent=39 // pred_check
          %p243 = pneg %p107
        $region50: #{tpu_custom_call.1} parent=39 // pred_check_branch
          %245 = sbr.rel (%p243) target = $region52
        $region51: #{tpu_custom_call.1} parent=39 // pred_region
          %246 = dma.done [#allocation6], 2048
        $region52: #{tpu_custom_call.1} parent=39 // pred_fallthru
          _
        %s247 = sand.u32 %s31, 1
        %s248 = scalar_lea.sflag [#allocation3], %s247
        %s249 = sand.u32 %s31, 1
        %s250 = smul.addr %s249, 8
        %s251 = scalar_lea.vmem [#allocation2], %s250
        %p252 = pneg %p44
        %p253 = pneg %p41
        %p254 = pneg %p65
        %p255 = pneg %p62
        %p256 = pneg %p86
        %p257 = pneg %p83
        %p258 = pneg %p107
        %p259 = pneg %p104
        %p260 = pneg %p128
        %p261 = pneg %p125
        %p262 = pneg %p154
        %p263 = pneg %p151
        %s264 = sand.u32 %s141, 1
        %s265 = scalar_lea.sflag [#allocation4], %s264
        %s266 = sand.u32 %s141, 1
        %s267 = smul.addr %s266, 8
        %s268 = scalar_lea.vmem [#allocation8], %s267
        %v270 = vld [vmem:[%s234] sm:$0xff]
        %271 = vxpose.xlu0.b32.start [1/16] %v270, 128
        %272 = vxpose.xlu0.b32.cont [2/16] 0, 128
        %273 = vxpose.xlu0.b32.cont [3/16] 0, 128
        %274 = vxpose.xlu0.b32.cont [4/16] 0, 128
        %275 = vxpose.xlu0.b32.cont [5/16] 0, 128
        %276 = vxpose.xlu0.b32.cont [6/16] 0, 128
        %277 = vxpose.xlu0.b32.cont [7/16] 0, 128
        %278 = vxpose.xlu0.b32.cont [8/16] 0, 128
        %279 = vxpose.xlu0.b32.cont [9/16] 0, 128
        %280 = vxpose.xlu0.b32.cont [10/16] 0, 128
        %281 = vxpose.xlu0.b32.cont [11/16] 0, 128
        %282 = vxpose.xlu0.b32.cont [12/16] 0, 128
        %283 = vxpose.xlu0.b32.cont [13/16] 0, 128
        %284 = vxpose.xlu0.b32.cont [14/16] 0, 128
        %285 = vxpose.xlu0.b32.cont [15/16] 0, 128
        %286 = vxpose.xlu0.b32.end [16/16] 0, 128
        %v287 = vpop.trf.xlu0
        %v288 = vpop.trf.xlu0
        %v289 = vpop.trf.xlu0
        %v290 = vpop.trf.xlu0
        %v291 = vpop.trf.xlu0
        %v292 = vpop.trf.xlu0
        %v293 = vpop.trf.xlu0
        %v294 = vpop.trf.xlu0
        %v295 = vpop.trf.xlu0
        %v296 = vpop.trf.xlu0
        %v297 = vpop.trf.xlu0
        %v298 = vpop.trf.xlu0
        %v299 = vpop.trf.xlu0
        %v300 = vpop.trf.xlu0
        %v301 = vpop.trf.xlu0
        %v302 = vpop.trf.xlu0
        %v303 = vlaneseq
        %v304 = vand.u32 %v303, 127
        %v305 = vlaneseq
        %v306 = vshrl.u32 %v305, 7
        %v307 = vsub.s32 0, %v306
        %v308 = vrot.slane %v287, %v307
        %310 = vbcast.lane.b32.xlu0 %v308, 256
        %v311 = vpop.permute.xlu0 %310
        %v312 = vlaneseq
        %v313 = vshrl.u32 %v312, 7
        %v314 = vsub.s32 1, %v313
        %v315 = vrot.slane %v287, %v314
        %317 = vbcast.lane.b32.xlu0 %v315, 256
        %v318 = vpop.permute.xlu0 %317
        %v319 = vlaneseq
        %v320 = vshrl.u32 %v319, 7
        %v321 = vsub.s32 2, %v320
        %v322 = vrot.slane %v287, %v321
        %324 = vbcast.lane.b32.xlu0 %v322, 256
        %v325 = vpop.permute.xlu0 %324
        %v326 = vlaneseq
        %v327 = vshrl.u32 %v326, 7
        %v328 = vsub.s32 3, %v327
        %v329 = vrot.slane %v287, %v328
        %331 = vbcast.lane.b32.xlu0 %v329, 256
        %v332 = vpop.permute.xlu0 %331
        %v333 = vlaneseq
        %v334 = vshrl.u32 %v333, 7
        %v335 = vsub.s32 4, %v334
        %v336 = vrot.slane %v287, %v335
        %338 = vbcast.lane.b32.xlu0 %v336, 256
        %v339 = vpop.permute.xlu0 %338
        %v340 = vlaneseq
        %v341 = vshrl.u32 %v340, 7
        %v342 = vsub.s32 5, %v341
        %v343 = vrot.slane %v287, %v342
        %345 = vbcast.lane.b32.xlu0 %v343, 256
        %v346 = vpop.permute.xlu0 %345
        %v347 = vlaneseq
        %v348 = vshrl.u32 %v347, 7
        %v349 = vsub.s32 6, %v348
        %v350 = vrot.slane %v287, %v349
        %352 = vbcast.lane.b32.xlu0 %v350, 256
        %v353 = vpop.permute.xlu0 %352
        %v354 = vlaneseq
        %v355 = vshrl.u32 %v354, 7
        %v356 = vsub.s32 7, %v355
        %v357 = vrot.slane %v287, %v356
        %359 = vbcast.lane.b32.xlu0 %v357, 256
        %v360 = vpop.permute.xlu0 %359
        %v361 = vlaneseq
        %v362 = vshrl.u32 %v361, 7
        %v363 = vsub.s32 0, %v362
        %v364 = vrot.slane %v288, %v363
        %366 = vbcast.lane.b32.xlu0 %v364, 256
        %v367 = vpop.permute.xlu0 %366
        %v368 = vlaneseq
        %v369 = vshrl.u32 %v368, 7
        %v370 = vsub.s32 1, %v369
        %v371 = vrot.slane %v288, %v370
        %373 = vbcast.lane.b32.xlu0 %v371, 256
        %v374 = vpop.permute.xlu0 %373
        %v375 = vlaneseq
        %v376 = vshrl.u32 %v375, 7
        %v377 = vsub.s32 2, %v376
        %v378 = vrot.slane %v288, %v377
        %380 = vbcast.lane.b32.xlu0 %v378, 256
        %v381 = vpop.permute.xlu0 %380
        %v382 = vlaneseq
        %v383 = vshrl.u32 %v382, 7
        %v384 = vsub.s32 3, %v383
        %v385 = vrot.slane %v288, %v384
        %387 = vbcast.lane.b32.xlu0 %v385, 256
        %v388 = vpop.permute.xlu0 %387
        %v389 = vlaneseq
        %v390 = vshrl.u32 %v389, 7
        %v391 = vsub.s32 4, %v390
        %v392 = vrot.slane %v288, %v391
        %394 = vbcast.lane.b32.xlu0 %v392, 256
        %v395 = vpop.permute.xlu0 %394
        %v396 = vlaneseq
        %v397 = vshrl.u32 %v396, 7
        %v398 = vsub.s32 5, %v397
        %v399 = vrot.slane %v288, %v398
        %401 = vbcast.lane.b32.xlu0 %v399, 256
        %v402 = vpop.permute.xlu0 %401
        %v403 = vlaneseq
        %v404 = vshrl.u32 %v403, 7
        %v405 = vsub.s32 6, %v404
        %v406 = vrot.slane %v288, %v405
        %408 = vbcast.lane.b32.xlu0 %v406, 256
        %v409 = vpop.permute.xlu0 %408
        %v410 = vlaneseq
        %v411 = vshrl.u32 %v410, 7
        %v412 = vsub.s32 7, %v411
        %v413 = vrot.slane %v288, %v412
        %415 = vbcast.lane.b32.xlu0 %v413, 256
        %v416 = vpop.permute.xlu0 %415
        %v417 = vlaneseq
        %v418 = vshrl.u32 %v417, 7
        %v419 = vsub.s32 0, %v418
        %v420 = vrot.slane %v289, %v419
        %422 = vbcast.lane.b32.xlu0 %v420, 256
        %v423 = vpop.permute.xlu0 %422
        %v424 = vlaneseq
        %v425 = vshrl.u32 %v424, 7
        %v426 = vsub.s32 1, %v425
        %v427 = vrot.slane %v289, %v426
        %429 = vbcast.lane.b32.xlu0 %v427, 256
        %v430 = vpop.permute.xlu0 %429
        %v431 = vlaneseq
        %v432 = vshrl.u32 %v431, 7
        %v433 = vsub.s32 2, %v432
        %v434 = vrot.slane %v289, %v433
        %436 = vbcast.lane.b32.xlu0 %v434, 256
        %v437 = vpop.permute.xlu0 %436
        %v438 = vlaneseq
        %v439 = vshrl.u32 %v438, 7
        %v440 = vsub.s32 3, %v439
        %v441 = vrot.slane %v289, %v440
        %443 = vbcast.lane.b32.xlu0 %v441, 256
        %v444 = vpop.permute.xlu0 %443
        %v445 = vlaneseq
        %v446 = vshrl.u32 %v445, 7
        %v447 = vsub.s32 4, %v446
        %v448 = vrot.slane %v289, %v447
        %450 = vbcast.lane.b32.xlu0 %v448, 256
        %v451 = vpop.permute.xlu0 %450
        %vm452 = vcmp.eq.s32.totalorder %v311, %v304
        %vm453 = vcmp.eq.s32.totalorder %v318, %v304
        %vm454 = vcmp.eq.s32.totalorder %v325, %v304
        %vm455 = vcmp.eq.s32.totalorder %v332, %v304
        %vm456 = vcmp.eq.s32.totalorder %v339, %v304
        %vm457 = vcmp.eq.s32.totalorder %v346, %v304
        %vm458 = vcmp.eq.s32.totalorder %v353, %v304
        %vm459 = vcmp.eq.s32.totalorder %v360, %v304
        %vm460 = vcmp.eq.s32.totalorder %v367, %v304
        %vm461 = vcmp.eq.s32.totalorder %v374, %v304
        %vm462 = vcmp.eq.s32.totalorder %v381, %v304
        %vm463 = vcmp.eq.s32.totalorder %v388, %v304
        %vm464 = vcmp.eq.s32.totalorder %v395, %v304
        %vm465 = vcmp.eq.s32.totalorder %v402, %v304
        %vm466 = vcmp.eq.s32.totalorder %v409, %v304
        %vm467 = vcmp.eq.s32.totalorder %v416, %v304
        %vm468 = vcmp.eq.s32.totalorder %v423, %v304
        %vm469 = vcmp.eq.s32.totalorder %v430, %v304
        %vm470 = vcmp.eq.s32.totalorder %v437, %v304
        %vm471 = vcmp.eq.s32.totalorder %v444, %v304
        %vm472 = vcmp.eq.s32.totalorder %v451, %v304
        %v473 = vsel %vm452, 1, 0
        %v474 = vsel %vm453, 1, 0
        %v475 = vsel %vm454, 1, 0
        %v476 = vsel %vm455, 1, 0
        %v477 = vsel %vm456, 1, 0
        %v478 = vsel %vm457, 1, 0
        %v479 = vsel %vm458, 1, 0
        %v480 = vsel %vm459, 1, 0
        %v481 = vsel %vm460, 1, 0
        %v482 = vsel %vm461, 1, 0
        %v483 = vsel %vm462, 1, 0
        %v484 = vsel %vm463, 1, 0
        %v485 = vsel %vm464, 1, 0
        %v486 = vsel %vm465, 1, 0
        %v487 = vsel %vm466, 1, 0
        %v488 = vsel %vm467, 1, 0
        %v489 = vsel %vm468, 1, 0
        %v490 = vsel %vm469, 1, 0
        %v491 = vsel %vm470, 1, 0
        %v492 = vsel %vm471, 1, 0
        %v493 = vsel %vm472, 1, 0
        %v494 = vcvt.s32.f32 %v473
        %v495 = vcvt.s32.f32 %v474
        %v496 = vcvt.s32.f32 %v475
        %v497 = vcvt.s32.f32 %v476
        %v498 = vcvt.s32.f32 %v477
        %v499 = vcvt.s32.f32 %v478
        %v500 = vcvt.s32.f32 %v479
        %v501 = vcvt.s32.f32 %v480
        %v502 = vcvt.s32.f32 %v481
        %v503 = vcvt.s32.f32 %v482
        %v504 = vcvt.s32.f32 %v483
        %v505 = vcvt.s32.f32 %v484
        %v506 = vcvt.s32.f32 %v485
        %v507 = vcvt.s32.f32 %v486
        %v508 = vcvt.s32.f32 %v487
        %v509 = vcvt.s32.f32 %v488
        %v510 = vcvt.s32.f32 %v489
        %v511 = vcvt.s32.f32 %v490
        %v512 = vcvt.s32.f32 %v491
        %v513 = vcvt.s32.f32 %v492
        %v514 = vcvt.s32.f32 %v493
        %v515 = vpack.c.bf16 %v494, %v494
        %v516 = vpack.c.bf16 %v495, %v495
        %v517 = vpack.c.bf16 %v496, %v496
        %v518 = vpack.c.bf16 %v497, %v497
        %v519 = vpack.c.bf16 %v498, %v498
        %v520 = vpack.c.bf16 %v499, %v499
        %v521 = vpack.c.bf16 %v500, %v500
        %v522 = vpack.c.bf16 %v501, %v501
        %v523 = vpack.c.bf16 %v502, %v502
        %v524 = vpack.c.bf16 %v503, %v503
        %v525 = vpack.c.bf16 %v504, %v504
        %v526 = vpack.c.bf16 %v505, %v505
        %v527 = vpack.c.bf16 %v506, %v506
        %v528 = vpack.c.bf16 %v507, %v507
        %v529 = vpack.c.bf16 %v508, %v508
        %v530 = vpack.c.bf16 %v509, %v509
        %v531 = vpack.c.bf16 %v510, %v510
        %v532 = vpack.c.bf16 %v511, %v511
        %v533 = vpack.c.bf16 %v512, %v512
        %v534 = vpack.c.bf16 %v513, %v513
        %v535 = vpack.c.bf16 %v514, %v514
        %v536 = vld [vmem:[#allocation5] sm:$0xf]
        %v537 = vld [vmem:[#allocation5 + $0x4] sm:$0xf]
        %v538 = vld [vmem:[#allocation5 + $0x8] sm:$0xf]
        %v539 = vld [vmem:[#allocation5 + $0xc] sm:$0xf]
        %v540 = vld [vmem:[#allocation5 + $0x10] sm:$0xf]
        %v541 = vld [vmem:[#allocation5 + $0x14] sm:$0xf]
        %v542 = vld [vmem:[#allocation5 + $0x18] sm:$0xf]
        %v543 = vld [vmem:[#allocation5 + $0x1c] sm:$0xf]
        %v544 = vld [vmem:[#allocation5 + $0x20] sm:$0xf]
        %v545 = vld [vmem:[#allocation5 + $0x24] sm:$0xf]
        %v546 = vld [vmem:[#allocation5 + $0x28] sm:$0xf]
        %v547 = vld [vmem:[#allocation5 + $0x2c] sm:$0xf]
        %v548 = vld [vmem:[#allocation5 + $0x30] sm:$0xf]
        %v549 = vld [vmem:[#allocation5 + $0x34] sm:$0xf]
        %v550 = vld [vmem:[#allocation5 + $0x38] sm:$0xf]
        %v551 = vld [vmem:[#allocation5 + $0x3c] sm:$0xf]
        %s552 = scalar_lea.vmem [#allocation5], 64
        %v553 = vld [vmem:[%s552] sm:$0xf]
        %v554 = vld [vmem:[%s552 + $0x4] sm:$0xf]
        %v555 = vld [vmem:[%s552 + $0x8] sm:$0xf]
        %v556 = vld [vmem:[%s552 + $0xc] sm:$0xf]
        %v557 = vld [vmem:[%s552 + $0x10] sm:$0xf]
        %v558 = vld [vmem:[%s552 + $0x14] sm:$0xf]
        %v559 = vld [vmem:[%s552 + $0x18] sm:$0xf]
        %v560 = vld [vmem:[%s552 + $0x1c] sm:$0xf]
        %v561 = vld [vmem:[%s552 + $0x20] sm:$0xf]
        %v562 = vld [vmem:[%s552 + $0x24] sm:$0xf]
        %v563 = vld [vmem:[%s552 + $0x28] sm:$0xf]
        %v564 = vld [vmem:[%s552 + $0x2c] sm:$0xf]
        %v565 = vld [vmem:[%s552 + $0x30] sm:$0xf]
        %v566 = vld [vmem:[%s552 + $0x34] sm:$0xf]
        %v567 = vld [vmem:[%s552 + $0x38] sm:$0xf]
        %v568 = vld [vmem:[%s552 + $0x3c] sm:$0xf]
        %v586 = vunpack.c.l.b16 %v516
        %v587 = vunpack.c.l.b16 %v517
        %v588 = vunpack.c.l.b16 %v518
        %v589 = vunpack.c.l.b16 %v519
        %v590 = vunpack.c.l.b16 %v520
        %v591 = vunpack.c.l.b16 %v521
        %v592 = vunpack.c.l.b16 %v522
        %v593 = vunpack.c.l.b16 %v523
        %v594 = vunpack.c.l.b16 %v524
        %v595 = vunpack.c.l.b16 %v525
        %v596 = vunpack.c.l.b16 %v526
        %v597 = vunpack.c.l.b16 %v527
        %v598 = vunpack.c.l.b16 %v528
        %v599 = vunpack.c.l.b16 %v529
        %v600 = vunpack.c.l.b16 %v530
        %v601 = vunpack.c.l.b16 %v531
        %v602 = vunpack.c.l.b16 %v532
        %v603 = vpack.c.b16 %v587, %v586
        %v604 = vpack.c.b16 %v589, %v588
        %v605 = vpack.c.b16 %v591, %v590
        %v606 = vpack.c.b16 %v593, %v592
        %v607 = vpack.c.b16 %v595, %v594
        %v608 = vpack.c.b16 %v597, %v596
        %v609 = vpack.c.b16 %v599, %v598
        %v610 = vpack.c.b16 %v601, %v600
        %v611 = vpack.c.b16 %v602, %v602
        %v637 = vunpack.c.l.b16 %v553
        %v638 = vunpack.c.l.b16 %v554
        %v639 = vunpack.c.l.b16 %v555
        %v640 = vunpack.c.l.b16 %v556
        %v641 = vunpack.c.l.b16 %v557
        %v642 = vunpack.c.l.b16 %v558
        %v643 = vunpack.c.l.b16 %v559
        %v644 = vunpack.c.l.b16 %v560
        %v645 = vunpack.c.l.b16 %v561
        %v646 = vunpack.c.l.b16 %v562
        %v647 = vunpack.c.l.b16 %v563
        %v648 = vunpack.c.l.b16 %v564
        %v649 = vunpack.c.l.b16 %v565
        %v650 = vunpack.c.l.b16 %v566
        %v651 = vunpack.c.l.b16 %v567
        %v652 = vunpack.c.l.b16 %v568
        %v653 = vpack.c.b16 %v638, %v637
        %v654 = vpack.c.b16 %v640, %v639
        %v655 = vpack.c.b16 %v642, %v641
        %v656 = vpack.c.b16 %v644, %v643
        %v657 = vpack.c.b16 %v646, %v645
        %v658 = vpack.c.b16 %v648, %v647
        %v659 = vpack.c.b16 %v650, %v649
        %v660 = vpack.c.b16 %v652, %v651
        %669 = vmatprep.subr.bf16.mxu0 0
        %670 = vmatpush1.bf16.msra.mxu0 %v653
        %671 = vmatprep.subr.bf16.mxu0 0
        %672 = vmatpush1.bf16.msra.mxu0 %v654
        %673 = vmatprep.subr.bf16.mxu0 0
        %674 = vmatpush1.bf16.msra.mxu0 %v655
        %675 = vmatprep.subr.bf16.mxu0 0
        %676 = vmatpush1.bf16.msra.mxu0 %v656
        %677 = vmatprep.subr.bf16.mxu0 0
        %678 = vmatpush1.bf16.msra.mxu0 %v657
        %679 = vmatprep.subr.bf16.mxu0 0
        %680 = vmatpush1.bf16.msra.mxu0 %v658
        %681 = vmatprep.subr.bf16.mxu0 0
        %682 = vmatpush1.bf16.msra.mxu0 %v659
        %683 = vmatprep.subr.bf16.mxu0 0
        %684 = vmatpush1.bf16.msra.mxu0 %v660
        %685 = vmatprep.subr.bf16.mxu0 0
        %686 = vmatpush1.bf16.msra.mxu0 0
        %687 = vmatprep.subr.bf16.mxu0 0
        %688 = vmatpush1.bf16.msra.mxu0 0
        %689 = vmatprep.subr.bf16.mxu0 0
        %690 = vmatpush1.bf16.msra.mxu0 0
        %691 = vmatprep.subr.bf16.mxu0 0
        %692 = vmatpush1.bf16.msra.mxu0 0
        %693 = vmatprep.subr.bf16.mxu0 0
        %694 = vmatpush1.bf16.msra.mxu0 0
        %695 = vmatprep.subr.bf16.mxu0 0
        %696 = vmatpush1.bf16.msra.mxu0 0
        %697 = vmatprep.subr.bf16.mxu0 0
        %698 = vmatpush1.bf16.msra.mxu0 0
        %699 = vmatprep.subr.bf16.mxu0 0
        %700 = vmatpush1.bf16.msra.mxu0 0
        %701 = vmatprep.mubr.bf16.mxu0 0
        %702 = vmatmul.mubr.bf16.gmra.mrb[0].mxu0 %v603
        %v703 = vpop.f32.mrb[0].mxu0
        %v704 = vadd.f32 0.0, %v703
        %v705 = vpop.f32.mrb[0].mxu0
        %v706 = vpop.f32.mrb[0].mxu0
        %v707 = vadd.f32 0.0, %v706
        %v708 = vpop.f32.mrb[0].mxu0
        %709 = vmatprep.mubr.bf16.mxu0 0
        %710 = vmatmul.mubr.bf16.gmra.mrb[0].mxu0 %v604
        %v711 = vpop.f32.mrb[0].mxu0
        %v712 = vadd.f32 0.0, %v711
        %v713 = vpop.f32.mrb[0].mxu0
        %v714 = vpop.f32.mrb[0].mxu0
        %v715 = vadd.f32 0.0, %v714
        %v716 = vpop.f32.mrb[0].mxu0
        %717 = vmatprep.mubr.bf16.mxu0 0
        %718 = vmatmul.mubr.bf16.gmra.mrb[0].mxu0 %v605
        %v719 = vpop.f32.mrb[0].mxu0
        %v720 = vadd.f32 0.0, %v719
        %v721 = vpop.f32.mrb[0].mxu0
        %v722 = vpop.f32.mrb[0].mxu0
        %v723 = vadd.f32 0.0, %v722
        %v724 = vpop.f32.mrb[0].mxu0
        %725 = vmatprep.mubr.bf16.mxu0 0
        %726 = vmatmul.mubr.bf16.gmra.mrb[0].mxu0 %v606
        %v727 = vpop.f32.mrb[0].mxu0
        %v728 = vadd.f32 0.0, %v727
        %v729 = vpop.f32.mrb[0].mxu0
        %v730 = vpop.f32.mrb[0].mxu0
        %v731 = vadd.f32 0.0, %v730
        %v732 = vpop.f32.mrb[0].mxu0
        %733 = vmatprep.mubr.bf16.mxu0 0
        %734 = vmatmul.mubr.bf16.gmra.mrb[0].mxu0 %v607
        %v735 = vpop.f32.mrb[0].mxu0
        %v736 = vadd.f32 0.0, %v735
        %v737 = vpop.f32.mrb[0].mxu0
        %v738 = vpop.f32.mrb[0].mxu0
        %v739 = vadd.f32 0.0, %v738
        %v740 = vpop.f32.mrb[0].mxu0
        %741 = vmatprep.mubr.bf16.mxu0 0
        %742 = vmatmul.mubr.bf16.gmra.mrb[0].mxu0 %v608
        %v743 = vpop.f32.mrb[0].mxu0
        %v744 = vadd.f32 0.0, %v743
        %v745 = vpop.f32.mrb[0].mxu0
        %v746 = vpop.f32.mrb[0].mxu0
        %v747 = vadd.f32 0.0, %v746
        %v748 = vpop.f32.mrb[0].mxu0
        %749 = vmatprep.mubr.bf16.mxu0 0
        %750 = vmatmul.mubr.bf16.gmra.mrb[0].mxu0 %v609
        %v751 = vpop.f32.mrb[0].mxu0
        %v752 = vadd.f32 0.0, %v751
        %v753 = vpop.f32.mrb[0].mxu0
        %v754 = vpop.f32.mrb[0].mxu0
        %v755 = vadd.f32 0.0, %v754
        %v756 = vpop.f32.mrb[0].mxu0
        %757 = vmatprep.mubr.bf16.mxu0 0
        %758 = vmatmul.mubr.bf16.gmra.mrb[0].mxu0 %v610
        %v759 = vpop.f32.mrb[0].mxu0
        %v760 = vadd.f32 0.0, %v759
        %v761 = vpop.f32.mrb[0].mxu0
        %v762 = vpop.f32.mrb[0].mxu0
        %v763 = vadd.f32 0.0, %v762
        %v764 = vpop.f32.mrb[0].mxu0
        %765 = vmatprep.mubr.bf16.mxu0 0
        %766 = vmatmul.mubr.bf16.gmra.mrb[0].mxu0 %v611
        %v767 = vpop.f32.mrb[0].mxu0
        %v768 = vadd.f32 0.0, %v767
        %v769 = vpop.f32.mrb[0].mxu0
        %v770 = vpop.f32.mrb[0].mxu0
        %v771 = vpop.f32.mrb[0].mxu0
        %772 = vdwg.mxu0
        %v774 = vunpack.c.l.b16 %v515
        %v775 = vpack.c.b16 %v586, %v774
        %v776 = vpack.c.b16 %v588, %v587
        %v777 = vpack.c.b16 %v590, %v589
        %v778 = vpack.c.b16 %v592, %v591
        %v779 = vpack.c.b16 %v594, %v593
        %v780 = vpack.c.b16 %v596, %v595
        %v781 = vpack.c.b16 %v598, %v597
        %v782 = vpack.c.b16 %v600, %v599
        %v783 = vpack.c.b16 %v601, %v601
        %v809 = vunpack.c.l.b16 %v536
        %v810 = vunpack.c.l.b16 %v537
        %v811 = vunpack.c.l.b16 %v538
        %v812 = vunpack.c.l.b16 %v539
        %v813 = vunpack.c.l.b16 %v540
        %v814 = vunpack.c.l.b16 %v541
        %v815 = vunpack.c.l.b16 %v542
        %v816 = vunpack.c.l.b16 %v543
        %v817 = vunpack.c.l.b16 %v544
        %v818 = vunpack.c.l.b16 %v545
        %v819 = vunpack.c.l.b16 %v546
        %v820 = vunpack.c.l.b16 %v547
        %v821 = vunpack.c.l.b16 %v548
        %v822 = vunpack.c.l.b16 %v549
        %v823 = vunpack.c.l.b16 %v550
        %v824 = vunpack.c.l.b16 %v551
        %v825 = vpack.c.b16 %v810, %v809
        %v826 = vpack.c.b16 %v812, %v811
        %v827 = vpack.c.b16 %v814, %v813
        %v828 = vpack.c.b16 %v816, %v815
        %v829 = vpack.c.b16 %v818, %v817
        %v830 = vpack.c.b16 %v820, %v819
        %v831 = vpack.c.b16 %v822, %v821
        %v832 = vpack.c.b16 %v824, %v823
        %841 = vmatprep.subr.bf16.mxu0 0
        %842 = vmatpush1.bf16.msra.mxu0 %v825
        %843 = vmatprep.subr.bf16.mxu0 0
        %844 = vmatpush1.bf16.msra.mxu0 %v826
        %845 = vmatprep.subr.bf16.mxu0 0
        %846 = vmatpush1.bf16.msra.mxu0 %v827
        %847 = vmatprep.subr.bf16.mxu0 0
        %848 = vmatpush1.bf16.msra.mxu0 %v828
        %849 = vmatprep.subr.bf16.mxu0 0
        %850 = vmatpush1.bf16.msra.mxu0 %v829
        %851 = vmatprep.subr.bf16.mxu0 0
        %852 = vmatpush1.bf16.msra.mxu0 %v830
        %853 = vmatprep.subr.bf16.mxu0 0
        %854 = vmatpush1.bf16.msra.mxu0 %v831
        %855 = vmatprep.subr.bf16.mxu0 0
        %856 = vmatpush1.bf16.msra.mxu0 %v832
        %857 = vmatprep.subr.bf16.mxu0 0
        %858 = vmatpush1.bf16.msra.mxu0 0
        %859 = vmatprep.subr.bf16.mxu0 0
        %860 = vmatpush1.bf16.msra.mxu0 0
        %861 = vmatprep.subr.bf16.mxu0 0
        %862 = vmatpush1.bf16.msra.mxu0 0
        %863 = vmatprep.subr.bf16.mxu0 0
        %864 = vmatpush1.bf16.msra.mxu0 0
        %865 = vmatprep.subr.bf16.mxu0 0
        %866 = vmatpush1.bf16.msra.mxu0 0
        %867 = vmatprep.subr.bf16.mxu0 0
        %868 = vmatpush1.bf16.msra.mxu0 0
        %869 = vmatprep.subr.bf16.mxu0 0
        %870 = vmatpush1.bf16.msra.mxu0 0
        %871 = vmatprep.subr.bf16.mxu0 0
        %872 = vmatpush1.bf16.msra.mxu0 0
        %873 = vmatprep.mubr.bf16.mxu0 0
        %874 = vmatmul.mubr.bf16.gmra.mrb[0].mxu0 %v775
        %v875 = vpop.f32.mrb[0].mxu0
        %v876 = vadd.f32 %v704, %v875
        %v877 = vpop.f32.mrb[0].mxu0
        %v878 = vpop.f32.mrb[0].mxu0
        %v879 = vadd.f32 %v707, %v878
        %v880 = vpop.f32.mrb[0].mxu0
        %881 = vmatprep.mubr.bf16.mxu0 0
        %882 = vmatmul.mubr.bf16.gmra.mrb[0].mxu0 %v776
        %v883 = vpop.f32.mrb[0].mxu0
        %v884 = vadd.f32 %v712, %v883
        %v885 = vpop.f32.mrb[0].mxu0
        %v886 = vpop.f32.mrb[0].mxu0
        %v887 = vadd.f32 %v715, %v886
        %v888 = vpop.f32.mrb[0].mxu0
        %889 = vmatprep.mubr.bf16.mxu0 0
        %890 = vmatmul.mubr.bf16.gmra.mrb[0].mxu0 %v777
        %v891 = vpop.f32.mrb[0].mxu0
        %v892 = vadd.f32 %v720, %v891
        %v893 = vpop.f32.mrb[0].mxu0
        %v894 = vpop.f32.mrb[0].mxu0
        %v895 = vadd.f32 %v723, %v894
        %v896 = vpop.f32.mrb[0].mxu0
        %897 = vmatprep.mubr.bf16.mxu0 0
        %898 = vmatmul.mubr.bf16.gmra.mrb[0].mxu0 %v778
        %v899 = vpop.f32.mrb[0].mxu0
        %v900 = vadd.f32 %v728, %v899
        %v901 = vpop.f32.mrb[0].mxu0
        %v902 = vpop.f32.mrb[0].mxu0
        %v903 = vadd.f32 %v731, %v902
        %v904 = vpop.f32.mrb[0].mxu0
        %905 = vmatprep.mubr.bf16.mxu0 0
        %906 = vmatmul.mubr.bf16.gmra.mrb[0].mxu0 %v779
        %v907 = vpop.f32.mrb[0].mxu0
        %v908 = vadd.f32 %v736, %v907
        %v909 = vpop.f32.mrb[0].mxu0
        %v910 = vpop.f32.mrb[0].mxu0
        %v911 = vadd.f32 %v739, %v910
        %v912 = vpop.f32.mrb[0].mxu0
        %913 = vmatprep.mubr.bf16.mxu0 0
        %914 = vmatmul.mubr.bf16.gmra.mrb[0].mxu0 %v780
        %v915 = vpop.f32.mrb[0].mxu0
        %v916 = vadd.f32 %v744, %v915
        %v917 = vpop.f32.mrb[0].mxu0
        %v918 = vpop.f32.mrb[0].mxu0
        %v919 = vadd.f32 %v747, %v918
        %v920 = vpop.f32.mrb[0].mxu0
        %921 = vmatprep.mubr.bf16.mxu0 0
        %922 = vmatmul.mubr.bf16.gmra.mrb[0].mxu0 %v781
        %v923 = vpop.f32.mrb[0].mxu0
        %v924 = vadd.f32 %v752, %v923
        %v925 = vpop.f32.mrb[0].mxu0
        %v926 = vpop.f32.mrb[0].mxu0
        %v927 = vadd.f32 %v755, %v926
        %v928 = vpop.f32.mrb[0].mxu0
        %929 = vmatprep.mubr.bf16.mxu0 0
        %930 = vmatmul.mubr.bf16.gmra.mrb[0].mxu0 %v782
        %v931 = vpop.f32.mrb[0].mxu0
        %v932 = vadd.f32 %v760, %v931
        %v933 = vpop.f32.mrb[0].mxu0
        %v934 = vpop.f32.mrb[0].mxu0
        %v935 = vadd.f32 %v763, %v934
        %v936 = vpop.f32.mrb[0].mxu0
        %937 = vmatprep.mubr.bf16.mxu0 0
        %938 = vmatmul.mubr.bf16.gmra.mrb[0].mxu0 %v783
        %v939 = vpop.f32.mrb[0].mxu0
        %v940 = vadd.f32 %v768, %v939
        %v941 = vpop.f32.mrb[0].mxu0
        %v942 = vpop.f32.mrb[0].mxu0
        %v943 = vpop.f32.mrb[0].mxu0
        %944 = vdwg.mxu0
        %s945 = scalar_lea.vmem [#allocation5], 128
        %v946 = vld [vmem:[%s945] sm:$0xf]
        %v947 = vld [vmem:[%s945 + $0x4] sm:$0xf]
        %v948 = vld [vmem:[%s945 + $0x8] sm:$0xf]
        %v949 = vld [vmem:[%s945 + $0xc] sm:$0xf]
        %v950 = vld [vmem:[%s945 + $0x10] sm:$0xf]
        %v951 = vld [vmem:[%s945 + $0x14] sm:$0xf]
        %v952 = vld [vmem:[%s945 + $0x18] sm:$0xf]
        %v953 = vld [vmem:[%s945 + $0x1c] sm:$0xf]
        %v954 = vld [vmem:[%s945 + $0x20] sm:$0xf]
        %v955 = vld [vmem:[%s945 + $0x24] sm:$0xf]
        %v956 = vld [vmem:[%s945 + $0x28] sm:$0xf]
        %v957 = vld [vmem:[%s945 + $0x2c] sm:$0xf]
        %v958 = vld [vmem:[%s945 + $0x30] sm:$0xf]
        %v959 = vld [vmem:[%s945 + $0x34] sm:$0xf]
        %v960 = vld [vmem:[%s945 + $0x38] sm:$0xf]
        %v961 = vld [vmem:[%s945 + $0x3c] sm:$0xf]
        %v963 = vunpack.c.l.b16 %v533
        %v964 = vpack.c.b16 %v602, %v601
        %v965 = vpack.c.b16 %v963, %v963
        %v984 = vunpack.c.l.b16 %v946
        %v985 = vunpack.c.l.b16 %v947
        %v986 = vunpack.c.l.b16 %v948
        %v987 = vunpack.c.l.b16 %v949
        %v988 = vunpack.c.l.b16 %v950
        %v989 = vunpack.c.l.b16 %v951
        %v990 = vunpack.c.l.b16 %v952
        %v991 = vunpack.c.l.b16 %v953
        %v992 = vunpack.c.l.b16 %v954
        %v993 = vunpack.c.l.b16 %v955
        %v994 = vunpack.c.l.b16 %v956
        %v995 = vunpack.c.l.b16 %v957
        %v996 = vunpack.c.l.b16 %v958
        %v997 = vunpack.c.l.b16 %v959
        %v998 = vunpack.c.l.b16 %v960
        %v999 = vunpack.c.l.b16 %v961
        %v1000 = vpack.c.b16 %v985, %v984
        %v1001 = vpack.c.b16 %v987, %v986
        %v1002 = vpack.c.b16 %v989, %v988
        %v1003 = vpack.c.b16 %v991, %v990
        %v1004 = vpack.c.b16 %v993, %v992
        %v1005 = vpack.c.b16 %v995, %v994
        %v1006 = vpack.c.b16 %v997, %v996
        %v1007 = vpack.c.b16 %v999, %v998
        %1016 = vmatprep.subr.bf16.mxu0 0
        %1017 = vmatpush1.bf16.msra.mxu0 %v1000
        %1018 = vmatprep.subr.bf16.mxu0 0
        %1019 = vmatpush1.bf16.msra.mxu0 %v1001
        %1020 = vmatprep.subr.bf16.mxu0 0
        %1021 = vmatpush1.bf16.msra.mxu0 %v1002
        %1022 = vmatprep.subr.bf16.mxu0 0
        %1023 = vmatpush1.bf16.msra.mxu0 %v1003
        %1024 = vmatprep.subr.bf16.mxu0 0
        %1025 = vmatpush1.bf16.msra.mxu0 %v1004
        %1026 = vmatprep.subr.bf16.mxu0 0
        %1027 = vmatpush1.bf16.msra.mxu0 %v1005
        %1028 = vmatprep.subr.bf16.mxu0 0
        %1029 = vmatpush1.bf16.msra.mxu0 %v1006
        %1030 = vmatprep.subr.bf16.mxu0 0
        %1031 = vmatpush1.bf16.msra.mxu0 %v1007
        %1032 = vmatprep.subr.bf16.mxu0 0
        %1033 = vmatpush1.bf16.msra.mxu0 0
        %1034 = vmatprep.subr.bf16.mxu0 0
        %1035 = vmatpush1.bf16.msra.mxu0 0
        %1036 = vmatprep.subr.bf16.mxu0 0
        %1037 = vmatpush1.bf16.msra.mxu0 0
        %1038 = vmatprep.subr.bf16.mxu0 0
        %1039 = vmatpush1.bf16.msra.mxu0 0
        %1040 = vmatprep.subr.bf16.mxu0 0
        %1041 = vmatpush1.bf16.msra.mxu0 0
        %1042 = vmatprep.subr.bf16.mxu0 0
        %1043 = vmatpush1.bf16.msra.mxu0 0
        %1044 = vmatprep.subr.bf16.mxu0 0
        %1045 = vmatpush1.bf16.msra.mxu0 0
        %1046 = vmatprep.subr.bf16.mxu0 0
        %1047 = vmatpush1.bf16.msra.mxu0 0
        %1048 = vmatprep.mubr.bf16.mxu0 0
        %1049 = vmatmul.mubr.bf16.gmra.mrb[0].mxu0 %v776
        %v1050 = vpop.f32.mrb[0].mxu0
        %v1051 = vadd.f32 0.0, %v1050
        %v1052 = vpop.f32.mrb[0].mxu0
        %v1053 = vpop.f32.mrb[0].mxu0
        %v1054 = vadd.f32 0.0, %v1053
        %v1055 = vpop.f32.mrb[0].mxu0
        %1056 = vmatprep.mubr.bf16.mxu0 0
        %1057 = vmatmul.mubr.bf16.gmra.mrb[0].mxu0 %v777
        %v1058 = vpop.f32.mrb[0].mxu0
        %v1059 = vadd.f32 0.0, %v1058
        %v1060 = vpop.f32.mrb[0].mxu0
        %v1061 = vpop.f32.mrb[0].mxu0
        %v1062 = vadd.f32 0.0, %v1061
        %v1063 = vpop.f32.mrb[0].mxu0
        %1064 = vmatprep.mubr.bf16.mxu0 0
        %1065 = vmatmul.mubr.bf16.gmra.mrb[0].mxu0 %v778
        %v1066 = vpop.f32.mrb[0].mxu0
        %v1067 = vadd.f32 0.0, %v1066
        %v1068 = vpop.f32.mrb[0].mxu0
        %v1069 = vpop.f32.mrb[0].mxu0
        %v1070 = vadd.f32 0.0, %v1069
        %v1071 = vpop.f32.mrb[0].mxu0
        %1072 = vmatprep.mubr.bf16.mxu0 0
        %1073 = vmatmul.mubr.bf16.gmra.mrb[0].mxu0 %v779
        %v1074 = vpop.f32.mrb[0].mxu0
        %v1075 = vadd.f32 0.0, %v1074
        %v1076 = vpop.f32.mrb[0].mxu0
        %v1077 = vpop.f32.mrb[0].mxu0
        %v1078 = vadd.f32 0.0, %v1077
        %v1079 = vpop.f32.mrb[0].mxu0
        %1080 = vmatprep.mubr.bf16.mxu0 0
        %1081 = vmatmul.mubr.bf16.gmra.mrb[0].mxu0 %v780
        %v1082 = vpop.f32.mrb[0].mxu0
        %v1083 = vadd.f32 0.0, %v1082
        %v1084 = vpop.f32.mrb[0].mxu0
        %v1085 = vpop.f32.mrb[0].mxu0
        %v1086 = vadd.f32 0.0, %v1085
        %v1087 = vpop.f32.mrb[0].mxu0
        %1088 = vmatprep.mubr.bf16.mxu0 0
        %1089 = vmatmul.mubr.bf16.gmra.mrb[0].mxu0 %v781
        %v1090 = vpop.f32.mrb[0].mxu0
        %v1091 = vadd.f32 0.0, %v1090
        %v1092 = vpop.f32.mrb[0].mxu0
        %v1093 = vpop.f32.mrb[0].mxu0
        %v1094 = vadd.f32 0.0, %v1093
        %v1095 = vpop.f32.mrb[0].mxu0
        %1096 = vmatprep.mubr.bf16.mxu0 0
        %1097 = vmatmul.mubr.bf16.gmra.mrb[0].mxu0 %v782
        %v1098 = vpop.f32.mrb[0].mxu0
        %v1099 = vadd.f32 0.0, %v1098
        %v1100 = vpop.f32.mrb[0].mxu0
        %v1101 = vpop.f32.mrb[0].mxu0
        %v1102 = vadd.f32 0.0, %v1101
        %v1103 = vpop.f32.mrb[0].mxu0
        %1104 = vmatprep.mubr.bf16.mxu0 0
        %1105 = vmatmul.mubr.bf16.gmra.mrb[0].mxu0 %v964
        %v1106 = vpop.f32.mrb[0].mxu0
        %v1107 = vadd.f32 0.0, %v1106
        %v1108 = vpop.f32.mrb[0].mxu0
        %v1109 = vpop.f32.mrb[0].mxu0
        %v1110 = vadd.f32 0.0, %v1109
        %v1111 = vpop.f32.mrb[0].mxu0
        %1112 = vmatprep.mubr.bf16.mxu0 0
        %1113 = vmatmul.mubr.bf16.gmra.mrb[0].mxu0 %v965
        %v1114 = vpop.f32.mrb[0].mxu0
        %v1115 = vadd.f32 0.0, %v1114
        %v1116 = vpop.f32.mrb[0].mxu0
        %v1117 = vpop.f32.mrb[0].mxu0
        %v1118 = vpop.f32.mrb[0].mxu0
        %1119 = vdwg.mxu0
        %v1120 = vadd.f32 %v876, %v1051
        %v1121 = vadd.f32 %v879, %v1054
        %v1122 = vadd.f32 %v884, %v1059
        %v1123 = vadd.f32 %v887, %v1062
        %v1124 = vadd.f32 %v892, %v1067
        %v1125 = vadd.f32 %v895, %v1070
        %v1126 = vadd.f32 %v900, %v1075
        %v1127 = vadd.f32 %v903, %v1078
        %v1128 = vadd.f32 %v908, %v1083
        %v1129 = vadd.f32 %v911, %v1086
        %v1130 = vadd.f32 %v916, %v1091
        %v1131 = vadd.f32 %v919, %v1094
        %v1132 = vadd.f32 %v924, %v1099
        %v1133 = vadd.f32 %v927, %v1102
        %v1134 = vadd.f32 %v932, %v1107
        %v1135 = vadd.f32 %v935, %v1110
        %v1136 = vadd.f32 %v940, %v1115
        %s1137 = scalar_lea.vmem [#allocation5], 192
        %v1138 = vld [vmem:[%s1137] sm:$0xf]
        %v1139 = vld [vmem:[%s1137 + $0x4] sm:$0xf]
        %v1140 = vld [vmem:[%s1137 + $0x8] sm:$0xf]
        %v1141 = vld [vmem:[%s1137 + $0xc] sm:$0xf]
        %v1142 = vld [vmem:[%s1137 + $0x10] sm:$0xf]
        %v1143 = vld [vmem:[%s1137 + $0x14] sm:$0xf]
        %v1144 = vld [vmem:[%s1137 + $0x18] sm:$0xf]
        %v1145 = vld [vmem:[%s1137 + $0x1c] sm:$0xf]
        %v1146 = vld [vmem:[%s1137 + $0x20] sm:$0xf]
        %v1147 = vld [vmem:[%s1137 + $0x24] sm:$0xf]
        %v1148 = vld [vmem:[%s1137 + $0x28] sm:$0xf]
        %v1149 = vld [vmem:[%s1137 + $0x2c] sm:$0xf]
        %v1150 = vld [vmem:[%s1137 + $0x30] sm:$0xf]
        %v1151 = vld [vmem:[%s1137 + $0x34] sm:$0xf]
        %v1152 = vld [vmem:[%s1137 + $0x38] sm:$0xf]
        %v1153 = vld [vmem:[%s1137 + $0x3c] sm:$0xf]
        %v1155 = vunpack.c.l.b16 %v534
        %v1156 = vpack.c.b16 %v963, %v602
        %v1157 = vpack.c.b16 %v1155, %v1155
        %v1176 = vunpack.c.l.b16 %v1138
        %v1177 = vunpack.c.l.b16 %v1139
        %v1178 = vunpack.c.l.b16 %v1140
        %v1179 = vunpack.c.l.b16 %v1141
        %v1180 = vunpack.c.l.b16 %v1142
        %v1181 = vunpack.c.l.b16 %v1143
        %v1182 = vunpack.c.l.b16 %v1144
        %v1183 = vunpack.c.l.b16 %v1145
        %v1184 = vunpack.c.l.b16 %v1146
        %v1185 = vunpack.c.l.b16 %v1147
        %v1186 = vunpack.c.l.b16 %v1148
        %v1187 = vunpack.c.l.b16 %v1149
        %v1188 = vunpack.c.l.b16 %v1150
        %v1189 = vunpack.c.l.b16 %v1151
        %v1190 = vunpack.c.l.b16 %v1152
        %v1191 = vunpack.c.l.b16 %v1153
        %v1192 = vpack.c.b16 %v1177, %v1176
        %v1193 = vpack.c.b16 %v1179, %v1178
        %v1194 = vpack.c.b16 %v1181, %v1180
        %v1195 = vpack.c.b16 %v1183, %v1182
        %v1196 = vpack.c.b16 %v1185, %v1184
        %v1197 = vpack.c.b16 %v1187, %v1186
        %v1198 = vpack.c.b16 %v1189, %v1188
        %v1199 = vpack.c.b16 %v1191, %v1190
        %1208 = vmatprep.subr.bf16.mxu0 0
        %1209 = vmatpush1.bf16.msra.mxu0 %v1192
        %1210 = vmatprep.subr.bf16.mxu0 0
        %1211 = vmatpush1.bf16.msra.mxu0 %v1193
        %1212 = vmatprep.subr.bf16.mxu0 0
        %1213 = vmatpush1.bf16.msra.mxu0 %v1194
        %1214 = vmatprep.subr.bf16.mxu0 0
        %1215 = vmatpush1.bf16.msra.mxu0 %v1195
        %1216 = vmatprep.subr.bf16.mxu0 0
        %1217 = vmatpush1.bf16.msra.mxu0 %v1196
        %1218 = vmatprep.subr.bf16.mxu0 0
        %1219 = vmatpush1.bf16.msra.mxu0 %v1197
        %1220 = vmatprep.subr.bf16.mxu0 0
        %1221 = vmatpush1.bf16.msra.mxu0 %v1198
        %1222 = vmatprep.subr.bf16.mxu0 0
        %1223 = vmatpush1.bf16.msra.mxu0 %v1199
        %1224 = vmatprep.subr.bf16.mxu0 0
        %1225 = vmatpush1.bf16.msra.mxu0 0
        %1226 = vmatprep.subr.bf16.mxu0 0
        %1227 = vmatpush1.bf16.msra.mxu0 0
        %1228 = vmatprep.subr.bf16.mxu0 0
        %1229 = vmatpush1.bf16.msra.mxu0 0
        %1230 = vmatprep.subr.bf16.mxu0 0
        %1231 = vmatpush1.bf16.msra.mxu0 0
        %1232 = vmatprep.subr.bf16.mxu0 0
        %1233 = vmatpush1.bf16.msra.mxu0 0
        %1234 = vmatprep.subr.bf16.mxu0 0
        %1235 = vmatpush1.bf16.msra.mxu0 0
        %1236 = vmatprep.subr.bf16.mxu0 0
        %1237 = vmatpush1.bf16.msra.mxu0 0
        %1238 = vmatprep.subr.bf16.mxu0 0
        %1239 = vmatpush1.bf16.msra.mxu0 0
        %1240 = vmatprep.mubr.bf16.mxu0 0
        %1241 = vmatmul.mubr.bf16.gmra.mrb[0].mxu0 %v604
        %v1242 = vpop.f32.mrb[0].mxu0
        %v1243 = vadd.f32 0.0, %v1242
        %v1244 = vpop.f32.mrb[0].mxu0
        %v1245 = vpop.f32.mrb[0].mxu0
        %v1246 = vadd.f32 0.0, %v1245
        %v1247 = vpop.f32.mrb[0].mxu0
        %1248 = vmatprep.mubr.bf16.mxu0 0
        %1249 = vmatmul.mubr.bf16.gmra.mrb[0].mxu0 %v605
        %v1250 = vpop.f32.mrb[0].mxu0
        %v1251 = vadd.f32 0.0, %v1250
        %v1252 = vpop.f32.mrb[0].mxu0
        %v1253 = vpop.f32.mrb[0].mxu0
        %v1254 = vadd.f32 0.0, %v1253
        %v1255 = vpop.f32.mrb[0].mxu0
        %1256 = vmatprep.mubr.bf16.mxu0 0
        %1257 = vmatmul.mubr.bf16.gmra.mrb[0].mxu0 %v606
        %v1258 = vpop.f32.mrb[0].mxu0
        %v1259 = vadd.f32 0.0, %v1258
        %v1260 = vpop.f32.mrb[0].mxu0
        %v1261 = vpop.f32.mrb[0].mxu0
        %v1262 = vadd.f32 0.0, %v1261
        %v1263 = vpop.f32.mrb[0].mxu0
        %1264 = vmatprep.mubr.bf16.mxu0 0
        %1265 = vmatmul.mubr.bf16.gmra.mrb[0].mxu0 %v607
        %v1266 = vpop.f32.mrb[0].mxu0
        %v1267 = vadd.f32 0.0, %v1266
        %v1268 = vpop.f32.mrb[0].mxu0
        %v1269 = vpop.f32.mrb[0].mxu0
        %v1270 = vadd.f32 0.0, %v1269
        %v1271 = vpop.f32.mrb[0].mxu0
        %1272 = vmatprep.mubr.bf16.mxu0 0
        %1273 = vmatmul.mubr.bf16.gmra.mrb[0].mxu0 %v608
        %v1274 = vpop.f32.mrb[0].mxu0
        %v1275 = vadd.f32 0.0, %v1274
        %v1276 = vpop.f32.mrb[0].mxu0
        %v1277 = vpop.f32.mrb[0].mxu0
        %v1278 = vadd.f32 0.0, %v1277
        %v1279 = vpop.f32.mrb[0].mxu0
        %1280 = vmatprep.mubr.bf16.mxu0 0
        %1281 = vmatmul.mubr.bf16.gmra.mrb[0].mxu0 %v609
        %v1282 = vpop.f32.mrb[0].mxu0
        %v1283 = vadd.f32 0.0, %v1282
        %v1284 = vpop.f32.mrb[0].mxu0
        %v1285 = vpop.f32.mrb[0].mxu0
        %v1286 = vadd.f32 0.0, %v1285
        %v1287 = vpop.f32.mrb[0].mxu0
        %1288 = vmatprep.mubr.bf16.mxu0 0
        %1289 = vmatmul.mubr.bf16.gmra.mrb[0].mxu0 %v610
        %v1290 = vpop.f32.mrb[0].mxu0
        %v1291 = vadd.f32 0.0, %v1290
        %v1292 = vpop.f32.mrb[0].mxu0
        %v1293 = vpop.f32.mrb[0].mxu0
        %v1294 = vadd.f32 0.0, %v1293
        %v1295 = vpop.f32.mrb[0].mxu0
        %1296 = vmatprep.mubr.bf16.mxu0 0
        %1297 = vmatmul.mubr.bf16.gmra.mrb[0].mxu0 %v1156
        %v1298 = vpop.f32.mrb[0].mxu0
        %v1299 = vadd.f32 0.0, %v1298
        %v1300 = vpop.f32.mrb[0].mxu0
        %v1301 = vpop.f32.mrb[0].mxu0
        %v1302 = vadd.f32 0.0, %v1301
        %v1303 = vpop.f32.mrb[0].mxu0
        %1304 = vmatprep.mubr.bf16.mxu0 0
        %1305 = vmatmul.mubr.bf16.gmra.mrb[0].mxu0 %v1157
        %v1306 = vpop.f32.mrb[0].mxu0
        %v1307 = vadd.f32 0.0, %v1306
        %v1308 = vpop.f32.mrb[0].mxu0
        %v1309 = vpop.f32.mrb[0].mxu0
        %v1310 = vpop.f32.mrb[0].mxu0
        %1311 = vdwg.mxu0
        %v1312 = vadd.f32 %v1120, %v1243
        %v1313 = vadd.f32 %v1121, %v1246
        %v1314 = vadd.f32 %v1122, %v1251
        %v1315 = vadd.f32 %v1123, %v1254
        %v1316 = vadd.f32 %v1124, %v1259
        %v1317 = vadd.f32 %v1125, %v1262
        %v1318 = vadd.f32 %v1126, %v1267
        %v1319 = vadd.f32 %v1127, %v1270
        %v1320 = vadd.f32 %v1128, %v1275
        %v1321 = vadd.f32 %v1129, %v1278
        %v1322 = vadd.f32 %v1130, %v1283
        %v1323 = vadd.f32 %v1131, %v1286
        %v1324 = vadd.f32 %v1132, %v1291
        %v1325 = vadd.f32 %v1133, %v1294
        %v1326 = vadd.f32 %v1134, %v1299
        %v1327 = vadd.f32 %v1135, %v1302
        %v1328 = vadd.f32 %v1136, %v1307
        %s1329 = scalar_lea.vmem [#allocation5], 256
        %v1330 = vld [vmem:[%s1329] sm:$0xf]
        %v1331 = vld [vmem:[%s1329 + $0x4] sm:$0xf]
        %v1332 = vld [vmem:[%s1329 + $0x8] sm:$0xf]
        %v1333 = vld [vmem:[%s1329 + $0xc] sm:$0xf]
        %v1334 = vld [vmem:[%s1329 + $0x10] sm:$0xf]
        %v1335 = vld [vmem:[%s1329 + $0x14] sm:$0xf]
        %v1336 = vld [vmem:[%s1329 + $0x18] sm:$0xf]
        %v1337 = vld [vmem:[%s1329 + $0x1c] sm:$0xf]
        %v1338 = vld [vmem:[%s1329 + $0x20] sm:$0xf]
        %v1339 = vld [vmem:[%s1329 + $0x24] sm:$0xf]
        %v1340 = vld [vmem:[%s1329 + $0x28] sm:$0xf]
        %v1341 = vld [vmem:[%s1329 + $0x2c] sm:$0xf]
        %v1342 = vld [vmem:[%s1329 + $0x30] sm:$0xf]
        %v1343 = vld [vmem:[%s1329 + $0x34] sm:$0xf]
        %v1344 = vld [vmem:[%s1329 + $0x38] sm:$0xf]
        %v1345 = vld [vmem:[%s1329 + $0x3c] sm:$0xf]
        %v1347 = vunpack.c.l.b16 %v535
        %v1348 = vpack.c.b16 %v1155, %v963
        %v1349 = vpack.c.b16 %v1347, %v1347
        %v1368 = vunpack.c.l.b16 %v1330
        %v1369 = vunpack.c.l.b16 %v1331
        %v1370 = vunpack.c.l.b16 %v1332
        %v1371 = vunpack.c.l.b16 %v1333
        %v1372 = vunpack.c.l.b16 %v1334
        %v1373 = vunpack.c.l.b16 %v1335
        %v1374 = vunpack.c.l.b16 %v1336
        %v1375 = vunpack.c.l.b16 %v1337
        %v1376 = vunpack.c.l.b16 %v1338
        %v1377 = vunpack.c.l.b16 %v1339
        %v1378 = vunpack.c.l.b16 %v1340
        %v1379 = vunpack.c.l.b16 %v1341
        %v1380 = vunpack.c.l.b16 %v1342
        %v1381 = vunpack.c.l.b16 %v1343
        %v1382 = vunpack.c.l.b16 %v1344
        %v1383 = vunpack.c.l.b16 %v1345
        %v1384 = vpack.c.b16 %v1369, %v1368
        %v1385 = vpack.c.b16 %v1371, %v1370
        %v1386 = vpack.c.b16 %v1373, %v1372
        %v1387 = vpack.c.b16 %v1375, %v1374
        %v1388 = vpack.c.b16 %v1377, %v1376
        %v1389 = vpack.c.b16 %v1379, %v1378
        %v1390 = vpack.c.b16 %v1381, %v1380
        %v1391 = vpack.c.b16 %v1383, %v1382
        %1400 = vmatprep.subr.bf16.mxu0 0
        %1401 = vmatpush1.bf16.msra.mxu0 %v1384
        %1402 = vmatprep.subr.bf16.mxu0 0
        %1403 = vmatpush1.bf16.msra.mxu0 %v1385
        %1404 = vmatprep.subr.bf16.mxu0 0
        %1405 = vmatpush1.bf16.msra.mxu0 %v1386
        %1406 = vmatprep.subr.bf16.mxu0 0
        %1407 = vmatpush1.bf16.msra.mxu0 %v1387
        %1408 = vmatprep.subr.bf16.mxu0 0
        %1409 = vmatpush1.bf16.msra.mxu0 %v1388
        %1410 = vmatprep.subr.bf16.mxu0 0
        %1411 = vmatpush1.bf16.msra.mxu0 %v1389
        %1412 = vmatprep.subr.bf16.mxu0 0
        %1413 = vmatpush1.bf16.msra.mxu0 %v1390
        %1414 = vmatprep.subr.bf16.mxu0 0
        %1415 = vmatpush1.bf16.msra.mxu0 %v1391
        %1416 = vmatprep.subr.bf16.mxu0 0
        %1417 = vmatpush1.bf16.msra.mxu0 0
        %1418 = vmatprep.subr.bf16.mxu0 0
        %1419 = vmatpush1.bf16.msra.mxu0 0
        %1420 = vmatprep.subr.bf16.mxu0 0
        %1421 = vmatpush1.bf16.msra.mxu0 0
        %1422 = vmatprep.subr.bf16.mxu0 0
        %1423 = vmatpush1.bf16.msra.mxu0 0
        %1424 = vmatprep.subr.bf16.mxu0 0
        %1425 = vmatpush1.bf16.msra.mxu0 0
        %1426 = vmatprep.subr.bf16.mxu0 0
        %1427 = vmatpush1.bf16.msra.mxu0 0
        %1428 = vmatprep.subr.bf16.mxu0 0
        %1429 = vmatpush1.bf16.msra.mxu0 0
        %1430 = vmatprep.subr.bf16.mxu0 0
        %1431 = vmatpush1.bf16.msra.mxu0 0
        %1432 = vmatprep.mubr.bf16.mxu0 0
        %1433 = vmatmul.mubr.bf16.gmra.mrb[0].mxu0 %v777
        %v1434 = vpop.f32.mrb[0].mxu0
        %v1435 = vadd.f32 0.0, %v1434
        %v1436 = vpop.f32.mrb[0].mxu0
        %v1437 = vpop.f32.mrb[0].mxu0
        %v1438 = vadd.f32 0.0, %v1437
        %v1439 = vpop.f32.mrb[0].mxu0
        %1440 = vmatprep.mubr.bf16.mxu0 0
        %1441 = vmatmul.mubr.bf16.gmra.mrb[0].mxu0 %v778
        %v1442 = vpop.f32.mrb[0].mxu0
        %v1443 = vadd.f32 0.0, %v1442
        %v1444 = vpop.f32.mrb[0].mxu0
        %v1445 = vpop.f32.mrb[0].mxu0
        %v1446 = vadd.f32 0.0, %v1445
        %v1447 = vpop.f32.mrb[0].mxu0
        %1448 = vmatprep.mubr.bf16.mxu0 0
        %1449 = vmatmul.mubr.bf16.gmra.mrb[0].mxu0 %v779
        %v1450 = vpop.f32.mrb[0].mxu0
        %v1451 = vadd.f32 0.0, %v1450
        %v1452 = vpop.f32.mrb[0].mxu0
        %v1453 = vpop.f32.mrb[0].mxu0
        %v1454 = vadd.f32 0.0, %v1453
        %v1455 = vpop.f32.mrb[0].mxu0
        %1456 = vmatprep.mubr.bf16.mxu0 0
        %1457 = vmatmul.mubr.bf16.gmra.mrb[0].mxu0 %v780
        %v1458 = vpop.f32.mrb[0].mxu0
        %v1459 = vadd.f32 0.0, %v1458
        %v1460 = vpop.f32.mrb[0].mxu0
        %v1461 = vpop.f32.mrb[0].mxu0
        %v1462 = vadd.f32 0.0, %v1461
        %v1463 = vpop.f32.mrb[0].mxu0
        %1464 = vmatprep.mubr.bf16.mxu0 0
        %1465 = vmatmul.mubr.bf16.gmra.mrb[0].mxu0 %v781
        %v1466 = vpop.f32.mrb[0].mxu0
        %v1467 = vadd.f32 0.0, %v1466
        %v1468 = vpop.f32.mrb[0].mxu0
        %v1469 = vpop.f32.mrb[0].mxu0
        %v1470 = vadd.f32 0.0, %v1469
        %v1471 = vpop.f32.mrb[0].mxu0
        %1472 = vmatprep.mubr.bf16.mxu0 0
        %1473 = vmatmul.mubr.bf16.gmra.mrb[0].mxu0 %v782
        %v1474 = vpop.f32.mrb[0].mxu0
        %v1475 = vadd.f32 0.0, %v1474
        %v1476 = vpop.f32.mrb[0].mxu0
        %v1477 = vpop.f32.mrb[0].mxu0
        %v1478 = vadd.f32 0.0, %v1477
        %v1479 = vpop.f32.mrb[0].mxu0
        %1480 = vmatprep.mubr.bf16.mxu0 0
        %1481 = vmatmul.mubr.bf16.gmra.mrb[0].mxu0 %v964
        %v1482 = vpop.f32.mrb[0].mxu0
        %v1483 = vadd.f32 0.0, %v1482
        %v1484 = vpop.f32.mrb[0].mxu0
        %v1485 = vpop.f32.mrb[0].mxu0
        %v1486 = vadd.f32 0.0, %v1485
        %v1487 = vpop.f32.mrb[0].mxu0
        %1488 = vmatprep.mubr.bf16.mxu0 0
        %1489 = vmatmul.mubr.bf16.gmra.mrb[0].mxu0 %v1348
        %v1490 = vpop.f32.mrb[0].mxu0
        %v1491 = vadd.f32 0.0, %v1490
        %v1492 = vpop.f32.mrb[0].mxu0
        %v1493 = vpop.f32.mrb[0].mxu0
        %v1494 = vadd.f32 0.0, %v1493
        %v1495 = vpop.f32.mrb[0].mxu0
        %1496 = vmatprep.mubr.bf16.mxu0 0
        %1497 = vmatmul.mubr.bf16.gmra.mrb[0].mxu0 %v1349
        %v1498 = vpop.f32.mrb[0].mxu0
        %v1499 = vadd.f32 0.0, %v1498
        %v1500 = vpop.f32.mrb[0].mxu0
        %v1501 = vpop.f32.mrb[0].mxu0
        %v1502 = vpop.f32.mrb[0].mxu0
        %1503 = vdwg.mxu0
        %v1504 = vadd.f32 %v1312, %v1435
        %v1505 = vadd.f32 %v1313, %v1438
        %v1506 = vadd.f32 %v1314, %v1443
        %v1507 = vadd.f32 %v1315, %v1446
        %v1508 = vadd.f32 %v1316, %v1451
        %v1509 = vadd.f32 %v1317, %v1454
        %v1510 = vadd.f32 %v1318, %v1459
        %v1511 = vadd.f32 %v1319, %v1462
        %v1512 = vadd.f32 %v1320, %v1467
        %v1513 = vadd.f32 %v1321, %v1470
        %v1514 = vadd.f32 %v1322, %v1475
        %v1515 = vadd.f32 %v1323, %v1478
        %v1516 = vadd.f32 %v1324, %v1483
        %v1517 = vadd.f32 %v1325, %v1486
        %v1518 = vadd.f32 %v1326, %v1491
        %v1519 = vadd.f32 %v1327, %v1494
        %v1520 = vadd.f32 %v1328, %v1499
        %v1521 = vld [vmem:[%s2] sm:$0x1]
        %v1523 = vlaneseq
        %v1524 = vshrl.u32 %v1523, 7
        %v1525 = vsub.s32 0, %v1524
        %v1526 = vrot.slane %v1521, %v1525
        %v1528 = vadd.f32 %v1504, %v1526
        %v1529 = vadd.f32 %v1505, %v1526
        %v1530 = vadd.f32 %v1506, %v1526
        %v1531 = vadd.f32 %v1507, %v1526
        %v1532 = vadd.f32 %v1508, %v1526
        %v1533 = vadd.f32 %v1509, %v1526
        %v1534 = vadd.f32 %v1510, %v1526
        %v1535 = vadd.f32 %v1511, %v1526
        %v1536 = vadd.f32 %v1512, %v1526
        %v1537 = vadd.f32 %v1513, %v1526
        %v1538 = vadd.f32 %v1514, %v1526
        %v1539 = vadd.f32 %v1515, %v1526
        %v1540 = vadd.f32 %v1516, %v1526
        %v1541 = vadd.f32 %v1517, %v1526
        %v1542 = vadd.f32 %v1518, %v1526
        %v1543 = vadd.f32 %v1519, %v1526
        %v1544 = vadd.f32 %v1520, %v1526
        %v1545 = vmax.f32 %v1528, 0.0
        %v1546 = vmax.f32 %v1529, 0.0
        %v1547 = vmax.f32 %v1530, 0.0
        %v1548 = vmax.f32 %v1531, 0.0
        %v1549 = vmax.f32 %v1532, 0.0
        %v1550 = vmax.f32 %v1533, 0.0
        %v1551 = vmax.f32 %v1534, 0.0
        %v1552 = vmax.f32 %v1535, 0.0
        %v1553 = vmax.f32 %v1536, 0.0
        %v1554 = vmax.f32 %v1537, 0.0
        %v1555 = vmax.f32 %v1538, 0.0
        %v1556 = vmax.f32 %v1539, 0.0
        %v1557 = vmax.f32 %v1540, 0.0
        %v1558 = vmax.f32 %v1541, 0.0
        %v1559 = vmax.f32 %v1542, 0.0
        %v1560 = vmax.f32 %v1543, 0.0
        %v1561 = vmax.f32 %v1544, 0.0
        %v1562 = vmax.f32 %v1545, %v1549
        %v1563 = vmax.f32 %v1546, %v1550
        %v1564 = vmax.f32 %v1547, %v1551
        %v1565 = vmax.f32 %v1548, %v1552
        %v1566 = vmax.f32 %v1562, %v1553
        %v1567 = vmax.f32 %v1563, %v1554
        %v1568 = vmax.f32 %v1564, %v1555
        %v1569 = vmax.f32 %v1565, %v1556
        %v1570 = vmax.f32 %v1566, %v1557
        %v1571 = vmax.f32 %v1567, %v1558
        %v1572 = vmax.f32 %v1568, %v1559
        %v1573 = vmax.f32 %v1569, %v1560
        %v1574 = vmax.f32 %v1570, %v1561
        %v1575 = vmax.f32 %v1574, %v1571
        %v1576 = vmax.f32 %v1572, %v1573
        %v1577 = vmax.f32 %v1575, %v1576
        %v1578 = vpack.c.bf16 %v1577, %v1577
        %v1579 = vld [vmem:[#allocation7] sm:$0xff]
        %v1580 = vld [vmem:[#allocation7 + $0x8] sm:$0xff]
        %v1581 = vld [vmem:[#allocation7 + $0x10] sm:$0xff]
        %v1582 = vld [vmem:[#allocation7 + $0x18] sm:$0xff]
        %v1583 = vld [vmem:[#allocation7 + $0x20] sm:$0xff]
        %v1584 = vld [vmem:[#allocation7 + $0x28] sm:$0xff]
        %v1585 = vld [vmem:[#allocation7 + $0x30] sm:$0xff]
        %v1586 = vld [vmem:[#allocation7 + $0x38] sm:$0xff]
        %v1587 = vld [vmem:[#allocation7 + $0x40] sm:$0xff]
        %v1588 = vld [vmem:[#allocation7 + $0x48] sm:$0xff]
        %v1589 = vld [vmem:[#allocation7 + $0x50] sm:$0xff]
        %v1590 = vld [vmem:[#allocation7 + $0x58] sm:$0xff]
        %v1591 = vld [vmem:[#allocation7 + $0x60] sm:$0xff]
        %v1592 = vld [vmem:[#allocation7 + $0x68] sm:$0xff]
        %v1593 = vld [vmem:[#allocation7 + $0x70] sm:$0xff]
        %v1594 = vld [vmem:[#allocation7 + $0x78] sm:$0xff]
        %v1595 = vld [vmem:[%s4] sm:$0x3]
        %v1597 = vlaneseq
        %v1598 = vshrl.u32 %v1597, 7
        %v1599 = vsub.s32 0, %v1598
        %v1600 = vrot.slane %v1595, %v1599
        %v1601 = vlaneseq
        %v1602 = vshrl.u32 %v1601, 7
        %v1603 = vsub.s32 1, %v1602
        %v1604 = vrot.slane %v1595, %v1603
        %v1623 = vunpack.c.l.b16 %v1579
        %v1624 = vunpack.c.h.b16 %v1579
        %v1625 = vunpack.c.l.b16 %v1580
        %v1626 = vunpack.c.h.b16 %v1580
        %v1627 = vunpack.c.l.b16 %v1581
        %v1628 = vunpack.c.h.b16 %v1581
        %v1629 = vunpack.c.l.b16 %v1582
        %v1630 = vunpack.c.h.b16 %v1582
        %v1631 = vunpack.c.l.b16 %v1583
        %v1632 = vunpack.c.h.b16 %v1583
        %v1633 = vunpack.c.l.b16 %v1584
        %v1634 = vunpack.c.h.b16 %v1584
        %v1635 = vunpack.c.l.b16 %v1585
        %v1636 = vunpack.c.h.b16 %v1585
        %v1637 = vunpack.c.l.b16 %v1586
        %v1638 = vunpack.c.h.b16 %v1586
        %v1639 = vunpack.c.l.b16 %v1587
        %v1640 = vunpack.c.h.b16 %v1587
        %v1641 = vunpack.c.l.b16 %v1588
        %v1642 = vunpack.c.h.b16 %v1588
        %v1643 = vunpack.c.l.b16 %v1589
        %v1644 = vunpack.c.h.b16 %v1589
        %v1645 = vunpack.c.l.b16 %v1590
        %v1646 = vunpack.c.h.b16 %v1590
        %v1647 = vunpack.c.l.b16 %v1591
        %v1648 = vunpack.c.h.b16 %v1591
        %v1649 = vunpack.c.l.b16 %v1592
        %v1650 = vunpack.c.h.b16 %v1592
        %v1651 = vunpack.c.l.b16 %v1593
        %v1652 = vunpack.c.h.b16 %v1593
        %v1653 = vunpack.c.l.b16 %v1594
        %v1654 = vunpack.c.h.b16 %v1594
        %v1655 = vpack.c.b16 %v1625, %v1623
        %v1656 = vpack.c.b16 %v1626, %v1624
        %v1657 = vpack.c.b16 %v1629, %v1627
        %v1658 = vpack.c.b16 %v1630, %v1628
        %v1659 = vpack.c.b16 %v1633, %v1631
        %v1660 = vpack.c.b16 %v1634, %v1632
        %v1661 = vpack.c.b16 %v1637, %v1635
        %v1662 = vpack.c.b16 %v1638, %v1636
        %v1663 = vpack.c.b16 %v1641, %v1639
        %v1664 = vpack.c.b16 %v1642, %v1640
        %v1665 = vpack.c.b16 %v1645, %v1643
        %v1666 = vpack.c.b16 %v1646, %v1644
        %v1667 = vpack.c.b16 %v1649, %v1647
        %v1668 = vpack.c.b16 %v1650, %v1648
        %v1669 = vpack.c.b16 %v1653, %v1651
        %v1670 = vpack.c.b16 %v1654, %v1652
        %1687 = vmatprep.subr.bf16.mxu0 %v1656
        %1688 = vmatpush1.bf16.msra.mxu0 %v1655
        %1689 = vmatprep.subr.bf16.mxu0 %v1658
        %1690 = vmatpush1.bf16.msra.mxu0 %v1657
        %1691 = vmatprep.subr.bf16.mxu0 %v1660
        %1692 = vmatpush1.bf16.msra.mxu0 %v1659
        %1693 = vmatprep.subr.bf16.mxu0 %v1662
        %1694 = vmatpush1.bf16.msra.mxu0 %v1661
        %1695 = vmatprep.subr.bf16.mxu0 %v1664
        %1696 = vmatpush1.bf16.msra.mxu0 %v1663
        %1697 = vmatprep.subr.bf16.mxu0 %v1666
        %1698 = vmatpush1.bf16.msra.mxu0 %v1665
        %1699 = vmatprep.subr.bf16.mxu0 %v1668
        %1700 = vmatpush1.bf16.msra.mxu0 %v1667
        %1701 = vmatprep.subr.bf16.mxu0 %v1670
        %1702 = vmatpush1.bf16.msra.mxu0 %v1669
        %1703 = vmatprep.subr.bf16.mxu0 0
        %1704 = vmatpush1.bf16.msra.mxu0 0
        %1705 = vmatprep.subr.bf16.mxu0 0
        %1706 = vmatpush1.bf16.msra.mxu0 0
        %1707 = vmatprep.subr.bf16.mxu0 0
        %1708 = vmatpush1.bf16.msra.mxu0 0
        %1709 = vmatprep.subr.bf16.mxu0 0
        %1710 = vmatpush1.bf16.msra.mxu0 0
        %1711 = vmatprep.subr.bf16.mxu0 0
        %1712 = vmatpush1.bf16.msra.mxu0 0
        %1713 = vmatprep.subr.bf16.mxu0 0
        %1714 = vmatpush1.bf16.msra.mxu0 0
        %1715 = vmatprep.subr.bf16.mxu0 0
        %1716 = vmatpush1.bf16.msra.mxu0 0
        %1717 = vmatprep.subr.bf16.mxu0 0
        %1718 = vmatpush1.bf16.msra.mxu0 0
        %1719 = vmatprep.mubr.bf16.mxu0 0
        %1720 = vmatmul.mubr.bf16.gmra.mrb[0].mxu0 %v1578
        %v1721 = vpop.f32.mrb[0].mxu0
        %v1722 = vadd.f32 %v1600, %v1721
        %v1723 = vpop.f32.mrb[0].mxu0
        %v1724 = vadd.f32 %v1604, %v1723
        %v1725 = vpop.f32.mrb[0].mxu0
        %v1726 = vpop.f32.mrb[0].mxu0
        %1727 = vdwg.mxu0
        %v1728 = vmax.f32 %v1722, 0.0
        %v1729 = vxor.u32 %v1724, 2147483648
        %v1730 = vmul.f32 %v1729, 1.442695
        %v1731 = vpow.pop %v1730
        %v1732 = vadd.f32 %v1731, 1.0
        %v1733 = vrcp.pop %v1732
        %v1734 = vmul.f32 1.0, %v1733
        %v1735 = vmul.f32 %v1734, %v1728
        %v1736 = vsub.f32 1.0, %v1734
        %v1737 = vmul.f32 %v1736, %v1577
        %v1738 = vadd.f32 %v1735, %v1737
        %1739 = vst [vmem:[%s268] sm:$0xff] %v1738
        %s1740 = sand.u32 %s141, 1
        %s1741 = scalar_lea.sflag [#allocation4], %s1740
        %s1742 = sand.u32 %s141, 1
        %s1743 = smul.addr %s1742, 8
        %s1744 = scalar_lea.vmem [#allocation8], %s1743
        // Predicated region
        $region53: #{tpu_custom_call.1} parent=39 // pred_check
          %p1745 = pneg %p151
        $region54: #{tpu_custom_call.1} parent=39 // pred_check_branch
          %1747 = sbr.rel (%p1745) target = $region56
        $region55: #{tpu_custom_call.1} parent=39 // pred_region
          %s1749 = ssub.s32 128, 128
          %1750 = vsyncadd %s1741, %s1749
          %s1751 = smul.addr %s23, 128
          %s1752 = scalar_lea.hbm %s5, %s1751
          %s1754 = sshll.u32 %s1744, 4
          %s1755 = int_to_ptr.vmem [resolvable:$true] %s1754
          %1757 = dma.vmem_to_hbm [thread:$0]  %s1755, 128, %s1752, %s1741
        $region56: #{tpu_custom_call.1} parent=39 // pred_fallthru
          _
      $region40: #{tpu_custom_call.1} parent=5 // pred_fallthru
        _
      %p1758 = scmp.le.s32.totalorder 2, %s18
      // Predicated region
      $region57: #{tpu_custom_call.1} parent=5 // pred_check
        %p1759 = pneg %p1758
      $region58: #{tpu_custom_call.1} parent=5 // pred_check_branch
        %1761 = sbr.rel (%p1759) target = $region60
      $region59: #{tpu_custom_call.1} parent=5 // pred_region
        %s1762 = ssub.s32 %s18, 2
        // Predicated region
        $region61: #{tpu_custom_call.1} parent=59 // pred_check
          %p1763 = pneg %p157
        $region62: #{tpu_custom_call.1} parent=59 // pred_check_branch
          %1765 = sbr.rel (%p1763) target = $region64
        $region63: #{tpu_custom_call.1} parent=59 // pred_region
          %s1766 = sand.u32 %s142, 1
          %s1767 = scalar_lea.sflag [#allocation4], %s1766
          %s1768 = sand.u32 %s142, 1
          %s1769 = smul.addr %s1768, 8
          %s1770 = scalar_lea.vmem [#allocation8], %s1769
          %1771 = dma.done %s1767, 128
        $region64: #{tpu_custom_call.1} parent=59 // pred_fallthru
          _
      $region60: #{tpu_custom_call.1} parent=5 // pred_fallthru
        _
    $region6: #{tpu_custom_call.1} parent=1 // loop_footer
      %s22 = sadd.s32 1, %s18
    $region7: #{tpu_custom_call.1} parent=1 // loop_footer_branch
      %17 = sbr.rel target = $region3
    $region8: #{tpu_custom_call.1} parent=1 // loop_exit
      _
    %1772 = vsyncpa [#allocation3], 1
    %s1773 = scalar_lea.sflag [#allocation3], 1
    %1774 = vsyncpa %s1773, 1
    %1775 = vsyncpa [#allocation6], 1
    %1776 = vsyncpa [#allocation4], 1
    %s1777 = scalar_lea.sflag [#allocation4], 1
    %1778 = vsyncpa %s1777, 1

</llo_original>
